<compile_context>
chip_gen: v5e
topology: v5e:2x2
jax: 0.10.0
libtpu: 0.0.40
codegen_flags: <defaults>
</compile_context>

<pallas_src>
import jax
import jax.numpy as jnp
from jax.experimental import pallas as pl
from jax.experimental.pallas import tpu as pltpu


# --------------------------------------------------------------------------- kernel
def _qwen2_mlp_kernel(x_ref, wgu_ref, wd_ref, o_ref, acc_ref):
    """One (token-tile, intermediate-tile) step of the fused MLP.

    x_ref:   (TT, Hd)        token tile (compute dtype)
    wgu_ref: (Hd, 2*TI)      fused [gate_k | up_k] weight tile
    wd_ref:  (TI, Hd)        down-proj weight tile for this k
    o_ref:   (TT, Hd)        output tile (written on the last k step)
    acc_ref: (TT, Hd) f32    VMEM accumulator, resident across the k (reduction) axis
    """
    k = pl.program_id(1)

    @pl.when(k == 0)
    def _():
        acc_ref[...] = jnp.zeros_like(acc_ref)

    x = x_ref[...]
    # Fused gate+up projection: a single MXU matmul with f32 accumulation.
    gu = jnp.dot(x, wgu_ref[...], preferred_element_type=jnp.float32)
    ti = gu.shape[1] // 2
    gate = gu[:, :ti]          # TI is a multiple of 128 -> lane-aligned split
    up = gu[:, ti:]
    # SiLU(gate) * up in f32 (exp -> EUP slot; multiplies are VALU filler under MXU).
    act = gate * jax.nn.sigmoid(gate) * up
    # Partial down-projection for this intermediate slice, accumulated in f32.
    acc_ref[...] += jnp.dot(act.astype(wd_ref.dtype), wd_ref[...],
                            preferred_element_type=jnp.float32)

    @pl.when(k == pl.num_programs(1) - 1)
    def _():
        o_ref[...] = acc_ref[...].astype(o_ref.dtype)


# ------------------------------------------------------------------ tile selection
def _vmem_estimate(tt, ti, hd, itemsize):
    """Double-buffered x/wgu/wd/out blocks + f32 accumulator + f32 (TT,2*TI) gu."""
    return (2 * (tt * hd + hd * 2 * ti + ti * hd) * itemsize   # in blocks, 2-buffered
            + 2 * tt * hd * itemsize                           # out block, 2-buffered
            + tt * hd * 4                                      # f32 accumulator
            + tt * 2 * ti * 4)                                 # f32 gate/up intermediate


def _tpu_generation_defaults():
    """Per-generation (TT, TI, vmem_budget_bytes).

    TT is sized to each generation's compute/HBM ridge point because weights are
    re-streamed once per token tile:
      v5e: 197 TF/s / 0.82 TB/s -> ridge ~240 -> TT=256
      v6e: 918 TF/s / 1.4  TB/s -> ridge ~650 -> TT=768
      v7x: 996 TF/s / 3.2  TB/s -> ridge ~310 -> TT=512 (and only 64 MiB VMEM/TC)
    """
    kind = ""
    try:
        kind = jax.devices()[0].device_kind.lower()
    except Exception:
        pass
    vmem_phys = None
    try:
        vmem_phys = int(pltpu.get_tpu_info().vmem_capacity_bytes)
    except Exception:
        pass

    if "v7" in kind or (vmem_phys is not None and vmem_phys <= 64 * 1024 * 1024):
        cap = min(vmem_phys or (64 * 1024 * 1024), 64 * 1024 * 1024)
        return 512, 512, int(cap * 0.85)            # ~56 MiB budget on v7x
    if "v5" in kind:
        cap = vmem_phys or (128 * 1024 * 1024)
        return 256, 512, int(cap * 0.85)
    cap = vmem_phys or (128 * 1024 * 1024)          # v6e / unknown
    return 768, 512, int(cap * 0.85)


# ----------------------------------------------------------------------- pallas call
def qwen2_mlp_pallas(x_tokens, wgu, wd, *, tt, ti, vmem_budget=None):
    """x_tokens: (T, Hd). wgu: (Hd, 2*Ip) per-TI-tile [gate|up] fused. wd: (Ip, Hd)."""
    T, Hd = x_tokens.shape
    ip = wd.shape[0]
    assert wgu.shape == (Hd, 2 * ip)
    assert T % tt == 0 and ip % ti == 0
    grid = (T // tt, ip // ti)

    itemsize = x_tokens.dtype.itemsize
    cost = pl.CostEstimate(
        flops=6 * T * Hd * ip,                           # 3 matmuls, 2*T*Hd*I each
        transcendentals=T * ip,                          # sigmoid exp
        bytes_accessed=(x_tokens.size * itemsize
                        # weights are re-streamed once per token tile:
                        + grid[0] * (wgu.size * wgu.dtype.itemsize
                                     + wd.size * wd.dtype.itemsize)
                        + T * Hd * itemsize),
    )

    # Always set the scoped VMEM limit (v5e's default is only 16 MiB); cap below the
    # per-generation physical budget (never above ~56 MiB on v7x's 64 MiB VMEM).
    est = _vmem_estimate(tt, ti, Hd, itemsize)
    vmem_limit = max(int(est * 1.2), 24 * 1024 * 1024)   # headroom for Mosaic scratch
    if vmem_budget is not None:
        vmem_limit = min(vmem_limit, int(vmem_budget))

    return pl.pallas_call(
        _qwen2_mlp_kernel,
        out_shape=jax.ShapeDtypeStruct((T, Hd), x_tokens.dtype),
        grid_spec=pltpu.PrefetchScalarGridSpec(
            num_scalar_prefetch=0,
            grid=grid,
            in_specs=[
                pl.BlockSpec((tt, Hd), lambda t, k: (t, 0)),       # x tile
                pl.BlockSpec((Hd, 2 * ti), lambda t, k: (0, k)),   # fused gate/up tile
                pl.BlockSpec((ti, Hd), lambda t, k: (k, 0)),       # down-proj tile
            ],
            out_specs=pl.BlockSpec((tt, Hd), lambda t, k: (t, 0)),
            scratch_shapes=[pltpu.VMEM((tt, Hd), jnp.float32)],
        ),
        compiler_params=pltpu.CompilerParams(
            dimension_semantics=("parallel", "arbitrary"),
            vmem_limit_bytes=vmem_limit,
        ),
        cost_estimate=cost,
    )(x_tokens, wgu, wd)


# ----------------------------------------------------------------- weight preparation
def prepare_qwen2_mlp_weights(gate_w, up_w, down_w, *, ti, compute_dtype=None):
    """Convert PyTorch Conv2d (OIHW, 1x1) weights to fused/tiled matmul layout.

    gate_w/up_w: (I, Hd, 1, 1), down_w: (Hd, I, 1, 1).
    Returns:
      wgu: (Hd, 2*Ip) where each TI-tile block k holds [gate_k | up_k] contiguously,
      wd:  (Ip, Hd), with the intermediate dim zero-padded to a multiple of TI.
    In production this is called once at weight-load time (weights stored in bf16),
    not per forward.
    """
    wg = jnp.transpose(gate_w[:, :, 0, 0])   # (Hd, I)
    wu = jnp.transpose(up_w[:, :, 0, 0])     # (Hd, I)
    wd = jnp.transpose(down_w[:, :, 0, 0])   # (I, Hd)
    if compute_dtype is not None:
        wg = wg.astype(compute_dtype)
        wu = wu.astype(compute_dtype)
        wd = wd.astype(compute_dtype)

    Hd, I = wg.shape
    ip = pl.cdiv(I, ti) * ti
    if ip != I:                              # zero-pad: padded columns contribute 0
        pad = ip - I
        wg = jnp.pad(wg, ((0, 0), (0, pad)))
        wu = jnp.pad(wu, ((0, 0), (0, pad)))
        wd = jnp.pad(wd, ((0, pad), (0, 0)))

    nk = ip // ti
    wgu = jnp.concatenate(
        [wg.reshape(Hd, nk, 1, ti), wu.reshape(Hd, nk, 1, ti)], axis=2
    ).reshape(Hd, 2 * ip)
    return wgu, wd


# ----------------------------------------------------------------------------- forward
def qwen2_mlp_forward(hidden_states_nchw, gate_w, up_w, down_w, *,
                      tt=None, ti=None, compute_dtype=jnp.bfloat16):
    """hidden_states_nchw: (B, hidden, H, W) — same NCHW layout as the PyTorch module
    (ANE style: (batch, hidden, 1, seq)).

    compute_dtype=jnp.bfloat16 (default) runs the matmuls bf16-on-the-wire with f32
    accumulation; compute_dtype=None keeps everything in the input dtype.
    Tile sizes default to per-TPU-generation ridge-point values (override via tt/ti).
    """
    B, C, H, W = hidden_states_nchw.shape
    out_dtype = hidden_states_nchw.dtype
    Hd = C
    T = B * H * W
    I = gate_w.shape[0]
    cd = compute_dtype if compute_dtype is not None else hidden_states_nchw.dtype
    itemsize = jnp.dtype(cd).itemsize

    gen_tt, gen_ti, vmem_budget = _tpu_generation_defaults()
    if tt is None:
        tt = gen_tt
    if ti is None:
        ti = gen_ti

    # Keep TI a multiple of 128 (lane-aligned gate|up split) and no bigger than the
    # 128-rounded intermediate size.
    ti = min(ti, pl.cdiv(I, 128) * 128)

    # Tokens: pad to a multiple of 8 (sublane), then pick the token tile.
    T8 = pl.cdiv(T, 8) * 8
    tt = min(tt, T8)
    # Megacore: guarantee >= 2 token tiles so both TensorCores get work (v7x) even
    # for decode / short sequences, when the shape allows an aligned split.
    if T8 // tt <= 1 and T8 >= 16 and T8 % 16 == 0:
        tt = T8 // 2

    # Shrink tiles (TI first, then TT) until the double-buffered footprint fits the
    # per-generation VMEM budget (relevant for v7x's 64 MiB).
    while _vmem_estimate(tt, ti, Hd, itemsize) > vmem_budget:
        if ti > 256 and (ti // 2) % 128 == 0:
            ti //= 2
        elif tt > 256 and (tt // 2) % 8 == 0:
            tt //= 2
        else:
            break

    # TODO(synk): for production, keep activations token-major (T, Hd) between layers
    # to avoid this NCHW<->token transpose/pad round trip (extra HBM traffic per call).
    x_tokens = jnp.transpose(hidden_states_nchw, (0, 2, 3, 1)).reshape(T, Hd)
    if compute_dtype is not None:
        x_tokens = x_tokens.astype(compute_dtype)

    tp = pl.cdiv(T, tt) * tt
    if tp != T:                              # zero-pad extra token rows
        x_tokens = jnp.pad(x_tokens, ((0, tp - T), (0, 0)))

    wgu, wd = prepare_qwen2_mlp_weights(gate_w, up_w, down_w, ti=ti,
                                        compute_dtype=compute_dtype)

    out_tokens = qwen2_mlp_pallas(x_tokens, wgu, wd, tt=tt, ti=ti,
                                  vmem_budget=vmem_budget)
    out_tokens = out_tokens[:T].astype(out_dtype)
    out = out_tokens.reshape(B, H, W, C)
    return jnp.transpose(out, (0, 3, 1, 2))


# --------------------------------------------------------------------------- reference
def qwen2_mlp_reference(hidden_states_nchw, gate_w, up_w, down_w):
    """Pure-JAX reference matching the PyTorch forward."""
    B, C, H, W = hidden_states_nchw.shape
    x = jnp.transpose(hidden_states_nchw, (0, 2, 3, 1)).reshape(-1, C)
    g = x @ jnp.transpose(gate_w[:, :, 0, 0])
    u = x @ jnp.transpose(up_w[:, :, 0, 0])
    d = (g * jax.nn.sigmoid(g) * u) @ jnp.transpose(down_w[:, :, 0, 0])
    return jnp.transpose(d.reshape(B, H, W, C), (0, 3, 1, 2))


if __name__ == "__main__":
    # Small synthetic config, sized to exercise the 2-D tiling:
    # hidden=256, intermediate=512, B=2, seq=64 -> T=128 tokens.
    hidden_size = 256
    intermediate_size = 512
    B, H, W = 2, 1, 64  # ANE-style: (batch, hidden, 1, seq)

    key = jax.random.PRNGKey(0)
    k_x, k_g, k_u, k_d = jax.random.split(key, 4)

    x = jax.random.normal(k_x, (B, hidden_size, H, W), dtype=jnp.float32)
    gate_w = jax.random.normal(
        k_g, (intermediate_size, hidden_size, 1, 1), dtype=jnp.float32) * 0.05
    up_w = jax.random.normal(
        k_u, (intermediate_size, hidden_size, 1, 1), dtype=jnp.float32) * 0.05
    down_w = jax.random.normal(
        k_d, (hidden_size, intermediate_size, 1, 1), dtype=jnp.float32) * 0.05

    ref = qwen2_mlp_reference(x, gate_w, up_w, down_w)

    # Default path: bf16-on-the-wire, per-generation ridge-point tiles, f32 accumulation.
    out_bf16 = qwen2_mlp_forward(x, gate_w, up_w, down_w)
    out_bf16 = jax.block_until_ready(out_bf16)
    assert out_bf16.shape == (B, hidden_size, H, W)
    assert jnp.max(jnp.abs(out_bf16.astype(jnp.float32) - ref)) < 0.1, \
        "bf16 path diverged from reference"

    # Explicitly tiled f32 path: tt=64, ti=128 -> grid=(2, 4), exercises the
    # parallel token axis and the k-axis f32 accumulator.
    out_f32 = qwen2_mlp_forward(x, gate_w, up_w, down_w, tt=64, ti=128,
                                compute_dtype=None)
    out_f32 = jax.block_until_ready(out_f32)
    assert jnp.allclose(out_f32, ref, atol=1e-3, rtol=1e-3), "f32 mismatch vs reference"

    print("KERNEL_OK")
</pallas_src>

<mosaic_0001>
module attributes {stable_mosaic.version = 11 : i64} {
  func.func @_qwen2_mlp_kernel(%arg0: i32, %arg1: i32, %arg2: memref<64x256xbf16, #tpu.memory_space<vmem>>, %arg3: memref<256x1024xbf16, #tpu.memory_space<vmem>>, %arg4: memref<512x256xbf16, #tpu.memory_space<vmem>>, %arg5: memref<64x256xbf16, #tpu.memory_space<vmem>>, %arg6: memref<64x256xf32, #tpu.memory_space<vmem>>) attributes {dimension_semantics = [#tpu.dimension_semantics<parallel>, #tpu.dimension_semantics<arbitrary>], iteration_bounds = array<i64: 2, 1>, scalar_prefetch = 0 : i64, scratch_operands = 1 : i64, tpu.core_type = #tpu.core_type<tc>, window_params = [{transform_indices = @transform_0, window_bounds = array<i64: 64, 256>}, {transform_indices = @transform_1, window_bounds = array<i64: 256, 1024>}, {transform_indices = @transform_2, window_bounds = array<i64: 512, 256>}, {transform_indices = @transform_3, window_bounds = array<i64: 64, 256>}]} {
    %c0_i32 = arith.constant 0 : i32
    %0 = arith.cmpi eq, %arg1, %c0_i32 : i32
    %1 = arith.extui %0 : i1 to i32
    %c0_i32_0 = arith.constant 0 : i32
    %2 = arith.cmpi ne, %1, %c0_i32_0 : i32
    scf.if %2 {
      %cst_14 = arith.constant 0.000000e+00 : f32
      %24 = vector.broadcast %cst_14 : f32 to vector<64x256xf32>
      %c0_15 = arith.constant 0 : index
      %c0_16 = arith.constant 0 : index
      %25 = vector.load %arg6[%c0_15, %c0_16] : memref<64x256xf32, #tpu.memory_space<vmem>>, vector<64x256xf32>
      tpu.vector_store %arg6[%c0_15, %c0_16], %24 {strides = array<i32>} : memref<64x256xf32, #tpu.memory_space<vmem>>, vector<64x256xf32>,
    } else {
    }
    %c0 = arith.constant 0 : index
    %c0_1 = arith.constant 0 : index
    %3 = vector.load %arg2[%c0, %c0_1] : memref<64x256xbf16, #tpu.memory_space<vmem>>, vector<64x256xbf16>
    %c0_2 = arith.constant 0 : index
    %c0_3 = arith.constant 0 : index
    %4 = vector.load %arg3[%c0_2, %c0_3] : memref<256x1024xbf16, #tpu.memory_space<vmem>>, vector<256x1024xbf16>
    %cst = arith.constant dense<0.000000e+00> : vector<64x1024xf32>
    %5 = tpu.matmul %3, %4, %cst {dimension_numbers = #tpu.dot_dimension_numbers<[1], [0], [0], [1], [0, 0, 1, 1], [], []>} : vector<64x256xbf16>, vector<256x1024xbf16>, vector<64x1024xf32> -> vector<64x1024xf32>
    %6 = vector.extract_strided_slice %5 {offsets = [0, 0], sizes = [64, 512], strides = [1, 1]} : vector<64x1024xf32> to vector<64x512xf32>
    %7 = vector.extract_strided_slice %5 {offsets = [0, 512], sizes = [64, 512], strides = [1, 1]} : vector<64x1024xf32> to vector<64x512xf32>
    %8 = arith.negf %6 : vector<64x512xf32>
    %9 = math.exp %8 : vector<64x512xf32>
    %cst_4 = arith.constant 1.000000e+00 : f32
    %10 = vector.broadcast %cst_4 : f32 to vector<64x512xf32>
    %11 = arith.addf %10, %9 : vector<64x512xf32>
    %12 = arith.divf %10, %11 : vector<64x512xf32>
    %13 = arith.mulf %6, %12 : vector<64x512xf32>
    %14 = arith.mulf %13, %7 : vector<64x512xf32>
    %c0_5 = arith.constant 0 : index
    %c0_6 = arith.constant 0 : index
    %15 = vector.load %arg6[%c0_5, %c0_6] : memref<64x256xf32, #tpu.memory_space<vmem>>, vector<64x256xf32>
    %16 = arith.truncf %14 : vector<64x512xf32> to vector<64x512xbf16>
    %c0_7 = arith.constant 0 : index
    %c0_8 = arith.constant 0 : index
    %17 = vector.load %arg4[%c0_7, %c0_8] : memref<512x256xbf16, #tpu.memory_space<vmem>>, vector<512x256xbf16>
    %cst_9 = arith.constant dense<0.000000e+00> : vector<64x256xf32>
    %18 = tpu.matmul %16, %17, %cst_9 {dimension_numbers = #tpu.dot_dimension_numbers<[1], [0], [0], [1], [0, 0, 1, 1], [], []>} : vector<64x512xbf16>, vector<512x256xbf16>, vector<64x256xf32> -> vector<64x256xf32>
    %19 = arith.addf %15, %18 : vector<64x256xf32>
    %c0_10 = arith.constant 0 : index
    %c0_11 = arith.constant 0 : index
    %20 = vector.load %arg6[%c0_10, %c0_11] : memref<64x256xf32, #tpu.memory_space<vmem>>, vector<64x256xf32>
    tpu.vector_store %arg6[%c0_10, %c0_11], %19 {strides = array<i32>} : memref<64x256xf32, #tpu.memory_space<vmem>>, vector<64x256xf32>,
    %c0_i32_12 = arith.constant 0 : i32
    %21 = arith.cmpi eq, %arg1, %c0_i32_12 : i32
    %22 = arith.extui %21 : i1 to i32
    %c0_i32_13 = arith.constant 0 : i32
    %23 = arith.cmpi ne, %22, %c0_i32_13 : i32
    scf.if %23 {
      %c0_14 = arith.constant 0 : index
      %c0_15 = arith.constant 0 : index
      %24 = vector.load %arg6[%c0_14, %c0_15] : memref<64x256xf32, #tpu.memory_space<vmem>>, vector<64x256xf32>
      %25 = arith.truncf %24 : vector<64x256xf32> to vector<64x256xbf16>
      %c0_16 = arith.constant 0 : index
      %c0_17 = arith.constant 0 : index
      %26 = vector.load %arg5[%c0_16, %c0_17] : memref<64x256xbf16, #tpu.memory_space<vmem>>, vector<64x256xbf16>
      tpu.vector_store %arg5[%c0_16, %c0_17], %25 {strides = array<i32>} : memref<64x256xbf16, #tpu.memory_space<vmem>>, vector<64x256xbf16>,
    } else {
    }
    return
  }
  func.func @transform_0(%arg0: i32, %arg1: i32) -> (i32, i32) {
    %c0_i32 = arith.constant 0 : i32
    %c0_i32_0 = arith.constant 0 : i32
    return %arg0, %c0_i32 : i32, i32
  }
  func.func @transform_1(%arg0: i32, %arg1: i32) -> (i32, i32) {
    %c0_i32 = arith.constant 0 : i32
    %c0_i32_0 = arith.constant 0 : i32
    return %c0_i32, %arg1 : i32, i32
  }
  func.func @transform_2(%arg0: i32, %arg1: i32) -> (i32, i32) {
    %c0_i32 = arith.constant 0 : i32
    %c0_i32_0 = arith.constant 0 : i32
    return %arg1, %c0_i32 : i32, i32
  }
  func.func @transform_3(%arg0: i32, %arg1: i32) -> (i32, i32) {
    %c0_i32 = arith.constant 0 : i32
    %c0_i32_0 = arith.constant 0 : i32
    return %arg0, %c0_i32 : i32, i32
  }
}

</mosaic_0001>

<llo_original>
// kernel: tpu_custom_call.1
$region0: #{tpu_custom_call.1}
  #allocation0 [shape = 'u32[]', space=smem, size = 0x4, offset = 0x4, fixed_abs, tag = 'smem constant byte address 0x4 - core index']
  #allocation1 [shape = 'u32[72,128]{1,0:T(1,128)}', space=vmem, size = 0x9000, scoped, tag = 'internal scratch']
  #allocation2 [shape = 'f32[64,256]{1,0:T(8,128)}', space=vmem, size = 0x10000, scoped, tag = 'scratch operand']
  %s0 = inlined_call_operand.hbm [shape: bf16[128,256], index: 0, kind: input, shape index: {}]
  %s1 = inlined_call_operand.hbm [shape: bf16[256,1024], index: 1, kind: input, shape index: {}]
  %s2 = inlined_call_operand.hbm [shape: bf16[512,256], index: 2, kind: input, shape index: {}]
  %s3 = inlined_call_operand.hbm [shape: bf16[128,256], index: 3, kind: output, shape index: {}]
  %s4 = sld [smem:[#allocation0]]
  $region65: #{tpu_custom_call.1} parent=0
    _
  %s6 = ssub.s32 1, %s4
  %s7 = scalar_select 0, %s6, %s4
  $region1: #{tpu_custom_call.1} parent=0
    #allocation3 [shape = 'u8[65536]{0}', space=vmem, size = 0x10000, scoped, tag = 'input window, operand 0']
    #allocation4 [shape = 's32[2]{0}', space=sflag, size = 0x8, scoped, tag = 'scoped memory for tpu_custom_call.1']
    #allocation5 [shape = 's32[2]{0}', space=sflag, size = 0x8, scoped, tag = 'scoped memory for tpu_custom_call.1']
    #allocation6 [shape = 'u8[524288]{0}', space=vmem, size = 0x80000, scoped, tag = 'input window, operand 1, single buffered']
    #allocation7 [shape = 's32[1]{0}', space=sflag, size = 0x4, scoped, tag = 'scoped memory for tpu_custom_call.1']
    #allocation8 [shape = 'u8[262144]{0}', space=vmem, size = 0x40000, scoped, tag = 'input window, operand 2, single buffered']
    #allocation9 [shape = 'u8[65536]{0}', space=vmem, size = 0x10000, scoped, tag = 'output window, operand 0']
    %8 = vsyncpa [#allocation4], 0
    %s9 = scalar_lea.sflag [#allocation4], 1
    %10 = vsyncpa %s9, 0
    %11 = vsyncpa [#allocation7], 0
    %12 = vsyncpa [#allocation5], 0
    %s13 = scalar_lea.sflag [#allocation5], 1
    %14 = vsyncpa %s13, 0
    loop: start=0, step=1, limit=4
    $region2: #{tpu_custom_call.1} parent=1 // loop_pre_header
      _
    $region3: #{tpu_custom_call.1} parent=1 // loop_header
      %s16 = sphi 0, %s20
      %p17 = scmp.ge.s32.totalorder %s16, 4
      %s23 = sphi 0, %s35
      %s24 = sphi 0, %s31
      %s25 = sphi 0, %s23
      %s26 = sphi 0, %s24
      %s27 = sphi 0, %s25
      %s28 = sphi 0, %s26
      %s38 = sphi 0, %s40
      %s41 = sphi 0, %s38
      %s42 = sphi 0, %s41
      %s58 = sphi 0, %s42
      %s64 = sphi 0, %s66
      %s67 = sphi 0, %s64
      %s68 = sphi 0, %s67
      %s84 = sphi 0, %s68
      %s90 = sphi 0, %s92
      %s93 = sphi 0, %s90
      %s94 = sphi 0, %s93
      %s110 = sphi 0, %s94
      %s116 = sphi 0, %s118
      %s119 = sphi 0, %s116
      %s120 = sphi 0, %s119
      %s136 = sphi 0, %s120
    $region4: #{tpu_custom_call.1} parent=1 // loop_header_branch
      %19 = sbr.rel (%p17) target = $region8
    $region5: #{tpu_custom_call.1} parent=1 // loop_body
      %s21 = ssub.s32 %s16, 1
      %s22 = ssub.s32 %s16, 2
      %s29 = sadd.s32 1, %s24
      %p30 = scmp.ge.s32.totalorder %s29, 1
      %s31 = scalar_select %p30, 0, %s29
      %s32 = sadd.s32 1, %s23
      %s33 = scalar_select %p30, %s32, %s23
      %p34 = scmp.ge.s32.totalorder %s33, 2
      %s35 = scalar_select %p34, 0, %s33
      %s36 = ssub.s32 %s23, %s35
      %p37 = scmp.eq.s32.totalorder %s36, 0
      %s39 = sadd.s32 %s38, 1
      %s40 = scalar_select %p37, %s38, %s39
      %p43 = pneg %p37
      %p44 = scmp.eq.s32.totalorder %s16, 1
      %p45 = por %p43, %p44
      %p46 = scmp.ne.s32.totalorder %s38, %s41
      %p47 = scmp.eq.s32.totalorder %s16, 0
      %p48 = por %p46, %p47
      %p49 = scmp.ne.s32.totalorder %s38, %s41
      %p50 = scmp.eq.s32.totalorder %s21, 1
      %p51 = por %p49, %p50
      %p52 = scmp.ne.s32.totalorder %s41, %s42
      %p53 = scmp.eq.s32.totalorder %s21, 0
      %p54 = por %p52, %p53
      %p55 = scmp.ne.s32.totalorder %s41, %s42
      %p56 = scmp.eq.s32.totalorder %s22, 1
      %p57 = por %p55, %p56
      %p59 = scmp.ne.s32.totalorder %s42, %s58
      %p60 = scmp.eq.s32.totalorder %s22, 0
      %p61 = por %p59, %p60
      %s62 = ssub.s32 %s24, %s31
      %p63 = scmp.eq.s32.totalorder %s62, 0
      %s65 = sadd.s32 %s64, 1
      %s66 = scalar_select %p63, %s64, %s65
      %p69 = pneg %p63
      %p70 = scmp.eq.s32.totalorder %s16, 1
      %p71 = por %p69, %p70
      %p72 = scmp.ne.s32.totalorder %s64, %s67
      %p73 = scmp.eq.s32.totalorder %s16, 0
      %p74 = por %p72, %p73
      %p75 = scmp.ne.s32.totalorder %s64, %s67
      %p76 = scmp.eq.s32.totalorder %s21, 1
      %p77 = por %p75, %p76
      %p78 = scmp.ne.s32.totalorder %s67, %s68
      %p79 = scmp.eq.s32.totalorder %s21, 0
      %p80 = por %p78, %p79
      %p81 = scmp.ne.s32.totalorder %s67, %s68
      %p82 = scmp.eq.s32.totalorder %s22, 1
      %p83 = por %p81, %p82
      %p85 = scmp.ne.s32.totalorder %s68, %s84
      %p86 = scmp.eq.s32.totalorder %s22, 0
      %p87 = por %p85, %p86
      %s88 = ssub.s32 %s24, %s31
      %p89 = scmp.eq.s32.totalorder %s88, 0
      %s91 = sadd.s32 %s90, 1
      %s92 = scalar_select %p89, %s90, %s91
      %p95 = pneg %p89
      %p96 = scmp.eq.s32.totalorder %s16, 1
      %p97 = por %p95, %p96
      %p98 = scmp.ne.s32.totalorder %s90, %s93
      %p99 = scmp.eq.s32.totalorder %s16, 0
      %p100 = por %p98, %p99
      %p101 = scmp.ne.s32.totalorder %s90, %s93
      %p102 = scmp.eq.s32.totalorder %s21, 1
      %p103 = por %p101, %p102
      %p104 = scmp.ne.s32.totalorder %s93, %s94
      %p105 = scmp.eq.s32.totalorder %s21, 0
      %p106 = por %p104, %p105
      %p107 = scmp.ne.s32.totalorder %s93, %s94
      %p108 = scmp.eq.s32.totalorder %s22, 1
      %p109 = por %p107, %p108
      %p111 = scmp.ne.s32.totalorder %s94, %s110
      %p112 = scmp.eq.s32.totalorder %s22, 0
      %p113 = por %p111, %p112
      %s114 = ssub.s32 %s23, %s35
      %p115 = scmp.eq.s32.totalorder %s114, 0
      %s117 = sadd.s32 %s116, 1
      %s118 = scalar_select %p115, %s116, %s117
      %p121 = pneg %p115
      %p122 = scmp.eq.s32.totalorder %s16, 1
      %p123 = por %p121, %p122
      %p124 = scmp.ne.s32.totalorder %s116, %s119
      %p125 = scmp.eq.s32.totalorder %s16, 0
      %p126 = por %p124, %p125
      %p127 = scmp.ne.s32.totalorder %s116, %s119
      %p128 = scmp.eq.s32.totalorder %s21, 1
      %p129 = por %p127, %p128
      %p130 = scmp.ne.s32.totalorder %s119, %s120
      %p131 = scmp.eq.s32.totalorder %s21, 0
      %p132 = por %p130, %p131
      %p133 = scmp.ne.s32.totalorder %s119, %s120
      %p134 = scmp.eq.s32.totalorder %s22, 1
      %p135 = por %p133, %p134
      %p137 = scmp.ne.s32.totalorder %s120, %s136
      %p138 = scmp.eq.s32.totalorder %s22, 0
      %p139 = por %p137, %p138
      %p140 = scmp.le.s32.totalorder 1, %s16
      %p141 = scmp.lt.s32.totalorder %s16, 3
      %p142 = pnand %p140, %p141
      %p143 = pneg %p142
      // Predicated region
      $region9: #{tpu_custom_call.1} parent=5 // pred_check
        _
      $region10: #{tpu_custom_call.1} parent=5 // pred_check_branch
        %145 = sbr.rel (%p142) target = $region12
      $region11: #{tpu_custom_call.1} parent=5 // pred_region
        %s146 = ssub.s32 %s16, 1
        // Predicated region
        $region13: #{tpu_custom_call.1} parent=11 // pred_check
          %p147 = pneg %p80
        $region14: #{tpu_custom_call.1} parent=11 // pred_check_branch
          %149 = sbr.rel (%p147) target = $region16
        $region15: #{tpu_custom_call.1} parent=11 // pred_region
          %s150 = smul.u32 8, %s26
          %152 = vsyncadd [#allocation7], 0
          %s153 = smul.addr %s150, 4
          %s154 = scalar_lea.hbm %s1, %s153
          %s155 = sshll.u32 %s154, 4
          %s156 = int_to_ptr.hbm [resolvable:$true] %s155
          %s157 = sshll.u32 [#allocation6], 4
          %s158 = int_to_ptr.vmem [resolvable:$true] %s157
          %163 = dma.hbm_to_vmem [thread:$0]  %s156, 16384, %s158, [#allocation7], 512, 512, 32
        $region16: #{tpu_custom_call.1} parent=11 // pred_fallthru
          _
        // Predicated region
        $region17: #{tpu_custom_call.1} parent=11 // pred_check
          %p164 = pneg %p106
        $region18: #{tpu_custom_call.1} parent=11 // pred_check_branch
          %166 = sbr.rel (%p164) target = $region20
        $region19: #{tpu_custom_call.1} parent=11 // pred_region
          %s167 = smul.u32 64, %s26
          %169 = vsyncadd [#allocation7], 0
          %s170 = smul.addr %s167, 2
          %s171 = smul.addr %s170, 4
          %s172 = scalar_lea.hbm %s2, %s171
          %s173 = sshll.u32 %s172, 4
          %s174 = int_to_ptr.hbm [resolvable:$true] %s173
          %s175 = sshll.u32 [#allocation8], 4
          %s176 = int_to_ptr.vmem [resolvable:$true] %s175
          %181 = dma.hbm_to_vmem [thread:$0]  %s174, 8192, %s176, [#allocation7], 128, 128, 8
        $region20: #{tpu_custom_call.1} parent=11 // pred_fallthru
          _
      $region12: #{tpu_custom_call.1} parent=5 // pred_fallthru
        _
      %p182 = scmp.lt.s32.totalorder %s16, 2
      // Predicated region
      $region21: #{tpu_custom_call.1} parent=5 // pred_check
        %p183 = pneg %p182
      $region22: #{tpu_custom_call.1} parent=5 // pred_check_branch
        %185 = sbr.rel (%p183) target = $region24
      $region23: #{tpu_custom_call.1} parent=5 // pred_region
        // Predicated region
        $region25: #{tpu_custom_call.1} parent=23 // pred_check
          %p186 = pneg %p48
        $region26: #{tpu_custom_call.1} parent=23 // pred_check_branch
          %188 = sbr.rel (%p186) target = $region28
        $region27: #{tpu_custom_call.1} parent=23 // pred_region
          %s189 = sand.u32 %s38, 1
          %s190 = scalar_lea.sflag [#allocation4], %s189
          %s191 = sand.u32 %s38, 1
          %s192 = smul.addr %s191, 64
          %s193 = scalar_lea.vmem [#allocation3], %s192
          %s194 = smul.u32 8, %s23
          %196 = vsyncadd %s190, 0
          %s197 = smul.addr %s194, 2
          %s198 = smul.addr %s197, 4
          %s199 = scalar_lea.hbm %s0, %s198
          %s200 = sshll.u32 %s199, 4
          %s201 = int_to_ptr.hbm [resolvable:$true] %s200
          %s202 = sshll.u32 %s193, 4
          %s203 = int_to_ptr.vmem [resolvable:$true] %s202
          %208 = dma.hbm_to_vmem [thread:$0]  %s201, 1024, %s203, %s190, 128, 128, 8
        $region28: #{tpu_custom_call.1} parent=23 // pred_fallthru
          _
      $region24: #{tpu_custom_call.1} parent=5 // pred_fallthru
        _
      %p209 = scmp.le.s32.totalorder 1, %s16
      %p210 = scmp.lt.s32.totalorder %s16, 3
      %p211 = pnand %p209, %p210
      %p212 = pneg %p211
      // Predicated region
      $region29: #{tpu_custom_call.1} parent=5 // pred_check
        _
      $region30: #{tpu_custom_call.1} parent=5 // pred_check_branch
        %214 = sbr.rel (%p211) target = $region32
      $region31: #{tpu_custom_call.1} parent=5 // pred_region
        %s215 = ssub.s32 %s16, 1
        %s216 = sand.u32 %s41, 1
        %s217 = scalar_lea.sflag [#allocation4], %s216
        %s218 = sand.u32 %s41, 1
        %s219 = smul.addr %s218, 64
        %s220 = scalar_lea.vmem [#allocation3], %s219
        // Predicated region
        $region33: #{tpu_custom_call.1} parent=31 // pred_check
          %p221 = pneg %p54
        $region34: #{tpu_custom_call.1} parent=31 // pred_check_branch
          %223 = sbr.rel (%p221) target = $region36
        $region35: #{tpu_custom_call.1} parent=31 // pred_region
          %225 = dma.done %s217, 1024
        $region36: #{tpu_custom_call.1} parent=31 // pred_fallthru
          _
        // Predicated region
        $region37: #{tpu_custom_call.1} parent=31 // pred_check
          %p226 = pneg %p80
        $region38: #{tpu_custom_call.1} parent=31 // pred_check_branch
          %228 = sbr.rel (%p226) target = $region40
        $region39: #{tpu_custom_call.1} parent=31 // pred_region
          %230 = dma.done [#allocation7], 16384
        $region40: #{tpu_custom_call.1} parent=31 // pred_fallthru
          _
        // Predicated region
        $region41: #{tpu_custom_call.1} parent=31 // pred_check
          %p231 = pneg %p106
        $region42: #{tpu_custom_call.1} parent=31 // pred_check_branch
          %233 = sbr.rel (%p231) target = $region44
        $region43: #{tpu_custom_call.1} parent=31 // pred_region
          %235 = dma.done [#allocation7], 8192
        $region44: #{tpu_custom_call.1} parent=31 // pred_fallthru
          _
        %s236 = sand.u32 %s41, 1
        %s237 = scalar_lea.sflag [#allocation4], %s236
        %s238 = sand.u32 %s41, 1
        %s239 = smul.addr %s238, 64
        %s240 = scalar_lea.vmem [#allocation3], %s239
        %p241 = pneg %p54
        %p242 = pneg %p51
        %p243 = pneg %p80
        %p244 = pneg %p77
        %p245 = pneg %p106
        %p246 = pneg %p103
        %p247 = pneg %p132
        %p248 = pneg %p129
        %s249 = sand.u32 %s119, 1
        %s250 = scalar_lea.sflag [#allocation5], %s249
        %s251 = sand.u32 %s119, 1
        %s252 = smul.addr %s251, 64
        %s253 = scalar_lea.vmem [#allocation9], %s252
        %s254 = smul.u32 8, %s25
        %s255 = smul.u32 8, %s26
        %s256 = smul.u32 64, %s26
        %s257 = smul.u32 8, %s25
        %p258 = scmp.eq.s32.totalorder %s26, 0
        // Predicated region
        $region45: #{tpu_custom_call.1} parent=31 // pred_check
          %p259 = pneg %p258
        $region46: #{tpu_custom_call.1} parent=31 // pred_check_branch
          %261 = sbr.rel (%p259) target = $region48
        $region47: #{tpu_custom_call.1} parent=31 // pred_region
          %262 = vst [vmem:[#allocation2] sm:$0xff] 0.0
          %263 = vst [vmem:[#allocation2 + $0x8] sm:$0xff] 0.0
          %264 = vst [vmem:[#allocation2 + $0x10] sm:$0xff] 0.0
          %265 = vst [vmem:[#allocation2 + $0x18] sm:$0xff] 0.0
          %266 = vst [vmem:[#allocation2 + $0x20] sm:$0xff] 0.0
          %267 = vst [vmem:[#allocation2 + $0x28] sm:$0xff] 0.0
          %268 = vst [vmem:[#allocation2 + $0x30] sm:$0xff] 0.0
          %269 = vst [vmem:[#allocation2 + $0x38] sm:$0xff] 0.0
          %270 = vst [vmem:[#allocation2 + $0x40] sm:$0xff] 0.0
          %271 = vst [vmem:[#allocation2 + $0x48] sm:$0xff] 0.0
          %272 = vst [vmem:[#allocation2 + $0x50] sm:$0xff] 0.0
          %273 = vst [vmem:[#allocation2 + $0x58] sm:$0xff] 0.0
          %274 = vst [vmem:[#allocation2 + $0x60] sm:$0xff] 0.0
          %275 = vst [vmem:[#allocation2 + $0x68] sm:$0xff] 0.0
          %276 = vst [vmem:[#allocation2 + $0x70] sm:$0xff] 0.0
          %277 = vst [vmem:[#allocation2 + $0x78] sm:$0xff] 0.0
        $region48: #{tpu_custom_call.1} parent=31 // pred_fallthru
          _
        %v278 = vld [vmem:[%s220] sm:$0xff]
        %v279 = vld [vmem:[%s220 + $0x8] sm:$0xff]
        %v280 = vld [vmem:[%s220 + $0x10] sm:$0xff]
        %v281 = vld [vmem:[%s220 + $0x18] sm:$0xff]
        %v282 = vld [vmem:[%s220 + $0x20] sm:$0xff]
        %v283 = vld [vmem:[%s220 + $0x28] sm:$0xff]
        %v284 = vld [vmem:[%s220 + $0x30] sm:$0xff]
        %v285 = vld [vmem:[%s220 + $0x38] sm:$0xff]
        %v286 = vld [vmem:[#allocation6] sm:$0xff]
        %v287 = vld [vmem:[#allocation6 + $0x8] sm:$0xff]
        %v288 = vld [vmem:[#allocation6 + $0x10] sm:$0xff]
        %v289 = vld [vmem:[#allocation6 + $0x18] sm:$0xff]
        %v290 = vld [vmem:[#allocation6 + $0x20] sm:$0xff]
        %v291 = vld [vmem:[#allocation6 + $0x28] sm:$0xff]
        %v292 = vld [vmem:[#allocation6 + $0x30] sm:$0xff]
        %v293 = vld [vmem:[#allocation6 + $0x38] sm:$0xff]
        %v294 = vld [vmem:[#allocation6 + $0x40] sm:$0xff]
        %v295 = vld [vmem:[#allocation6 + $0x48] sm:$0xff]
        %v296 = vld [vmem:[#allocation6 + $0x50] sm:$0xff]
        %v297 = vld [vmem:[#allocation6 + $0x58] sm:$0xff]
        %v298 = vld [vmem:[#allocation6 + $0x60] sm:$0xff]
        %v299 = vld [vmem:[#allocation6 + $0x68] sm:$0xff]
        %v300 = vld [vmem:[#allocation6 + $0x70] sm:$0xff]
        %v301 = vld [vmem:[#allocation6 + $0x78] sm:$0xff]
        %v302 = vld [vmem:[#allocation6 + $0x80] sm:$0xff]
        %v303 = vld [vmem:[#allocation6 + $0x88] sm:$0xff]
        %v304 = vld [vmem:[#allocation6 + $0x90] sm:$0xff]
        %v305 = vld [vmem:[#allocation6 + $0x98] sm:$0xff]
        %v306 = vld [vmem:[#allocation6 + $0xa0] sm:$0xff]
        %v307 = vld [vmem:[#allocation6 + $0xa8] sm:$0xff]
        %v308 = vld [vmem:[#allocation6 + $0xb0] sm:$0xff]
        %v309 = vld [vmem:[#allocation6 + $0xb8] sm:$0xff]
        %v310 = vld [vmem:[#allocation6 + $0xc0] sm:$0xff]
        %v311 = vld [vmem:[#allocation6 + $0xc8] sm:$0xff]
        %v312 = vld [vmem:[#allocation6 + $0xd0] sm:$0xff]
        %v313 = vld [vmem:[#allocation6 + $0xd8] sm:$0xff]
        %v314 = vld [vmem:[#allocation6 + $0xe0] sm:$0xff]
        %v315 = vld [vmem:[#allocation6 + $0xe8] sm:$0xff]
        %v316 = vld [vmem:[#allocation6 + $0xf0] sm:$0xff]
        %v317 = vld [vmem:[#allocation6 + $0xf8] sm:$0xff]
        %v318 = vld [vmem:[#allocation6 + $0x100] sm:$0xff]
        %v319 = vld [vmem:[#allocation6 + $0x108] sm:$0xff]
        %v320 = vld [vmem:[#allocation6 + $0x110] sm:$0xff]
        %v321 = vld [vmem:[#allocation6 + $0x118] sm:$0xff]
        %v322 = vld [vmem:[#allocation6 + $0x120] sm:$0xff]
        %v323 = vld [vmem:[#allocation6 + $0x128] sm:$0xff]
        %v324 = vld [vmem:[#allocation6 + $0x130] sm:$0xff]
        %v325 = vld [vmem:[#allocation6 + $0x138] sm:$0xff]
        %v326 = vld [vmem:[#allocation6 + $0x140] sm:$0xff]
        %v327 = vld [vmem:[#allocation6 + $0x148] sm:$0xff]
        %v328 = vld [vmem:[#allocation6 + $0x150] sm:$0xff]
        %v329 = vld [vmem:[#allocation6 + $0x158] sm:$0xff]
        %v330 = vld [vmem:[#allocation6 + $0x160] sm:$0xff]
        %v331 = vld [vmem:[#allocation6 + $0x168] sm:$0xff]
        %v332 = vld [vmem:[#allocation6 + $0x170] sm:$0xff]
        %v333 = vld [vmem:[#allocation6 + $0x178] sm:$0xff]
        %v334 = vld [vmem:[#allocation6 + $0x180] sm:$0xff]
        %v335 = vld [vmem:[#allocation6 + $0x188] sm:$0xff]
        %v336 = vld [vmem:[#allocation6 + $0x190] sm:$0xff]
        %v337 = vld [vmem:[#allocation6 + $0x198] sm:$0xff]
        %v338 = vld [vmem:[#allocation6 + $0x1a0] sm:$0xff]
        %v339 = vld [vmem:[#allocation6 + $0x1a8] sm:$0xff]
        %v340 = vld [vmem:[#allocation6 + $0x1b0] sm:$0xff]
        %v341 = vld [vmem:[#allocation6 + $0x1b8] sm:$0xff]
        %v342 = vld [vmem:[#allocation6 + $0x1c0] sm:$0xff]
        %v343 = vld [vmem:[#allocation6 + $0x1c8] sm:$0xff]
        %v344 = vld [vmem:[#allocation6 + $0x1d0] sm:$0xff]
        %v345 = vld [vmem:[#allocation6 + $0x1d8] sm:$0xff]
        %v346 = vld [vmem:[#allocation6 + $0x1e0] sm:$0xff]
        %v347 = vld [vmem:[#allocation6 + $0x1e8] sm:$0xff]
        %v348 = vld [vmem:[#allocation6 + $0x1f0] sm:$0xff]
        %v349 = vld [vmem:[#allocation6 + $0x1f8] sm:$0xff]
        %v350 = vld [vmem:[#allocation6 + $0x200] sm:$0xff]
        %v351 = vld [vmem:[#allocation6 + $0x208] sm:$0xff]
        %v352 = vld [vmem:[#allocation6 + $0x210] sm:$0xff]
        %v353 = vld [vmem:[#allocation6 + $0x218] sm:$0xff]
        %v354 = vld [vmem:[#allocation6 + $0x220] sm:$0xff]
        %v355 = vld [vmem:[#allocation6 + $0x228] sm:$0xff]
        %v356 = vld [vmem:[#allocation6 + $0x230] sm:$0xff]
        %v357 = vld [vmem:[#allocation6 + $0x238] sm:$0xff]
        %v358 = vld [vmem:[#allocation6 + $0x240] sm:$0xff]
        %v359 = vld [vmem:[#allocation6 + $0x248] sm:$0xff]
        %v360 = vld [vmem:[#allocation6 + $0x250] sm:$0xff]
        %v361 = vld [vmem:[#allocation6 + $0x258] sm:$0xff]
        %v362 = vld [vmem:[#allocation6 + $0x260] sm:$0xff]
        %v363 = vld [vmem:[#allocation6 + $0x268] sm:$0xff]
        %v364 = vld [vmem:[#allocation6 + $0x270] sm:$0xff]
        %v365 = vld [vmem:[#allocation6 + $0x278] sm:$0xff]
        %v366 = vld [vmem:[#allocation6 + $0x280] sm:$0xff]
        %v367 = vld [vmem:[#allocation6 + $0x288] sm:$0xff]
        %v368 = vld [vmem:[#allocation6 + $0x290] sm:$0xff]
        %v369 = vld [vmem:[#allocation6 + $0x298] sm:$0xff]
        %v370 = vld [vmem:[#allocation6 + $0x2a0] sm:$0xff]
        %v371 = vld [vmem:[#allocation6 + $0x2a8] sm:$0xff]
        %v372 = vld [vmem:[#allocation6 + $0x2b0] sm:$0xff]
        %v373 = vld [vmem:[#allocation6 + $0x2b8] sm:$0xff]
        %v374 = vld [vmem:[#allocation6 + $0x2c0] sm:$0xff]
        %v375 = vld [vmem:[#allocation6 + $0x2c8] sm:$0xff]
        %v376 = vld [vmem:[#allocation6 + $0x2d0] sm:$0xff]
        %v377 = vld [vmem:[#allocation6 + $0x2d8] sm:$0xff]
        %v378 = vld [vmem:[#allocation6 + $0x2e0] sm:$0xff]
        %v379 = vld [vmem:[#allocation6 + $0x2e8] sm:$0xff]
        %v380 = vld [vmem:[#allocation6 + $0x2f0] sm:$0xff]
        %v381 = vld [vmem:[#allocation6 + $0x2f8] sm:$0xff]
        %v382 = vld [vmem:[#allocation6 + $0x300] sm:$0xff]
        %v383 = vld [vmem:[#allocation6 + $0x308] sm:$0xff]
        %v384 = vld [vmem:[#allocation6 + $0x310] sm:$0xff]
        %v385 = vld [vmem:[#allocation6 + $0x318] sm:$0xff]
        %v386 = vld [vmem:[#allocation6 + $0x320] sm:$0xff]
        %v387 = vld [vmem:[#allocation6 + $0x328] sm:$0xff]
        %v388 = vld [vmem:[#allocation6 + $0x330] sm:$0xff]
        %v389 = vld [vmem:[#allocation6 + $0x338] sm:$0xff]
        %v390 = vld [vmem:[#allocation6 + $0x340] sm:$0xff]
        %v391 = vld [vmem:[#allocation6 + $0x348] sm:$0xff]
        %v392 = vld [vmem:[#allocation6 + $0x350] sm:$0xff]
        %v393 = vld [vmem:[#allocation6 + $0x358] sm:$0xff]
        %v394 = vld [vmem:[#allocation6 + $0x360] sm:$0xff]
        %v395 = vld [vmem:[#allocation6 + $0x368] sm:$0xff]
        %v396 = vld [vmem:[#allocation6 + $0x370] sm:$0xff]
        %v397 = vld [vmem:[#allocation6 + $0x378] sm:$0xff]
        %v398 = vld [vmem:[#allocation6 + $0x380] sm:$0xff]
        %v399 = vld [vmem:[#allocation6 + $0x388] sm:$0xff]
        %v400 = vld [vmem:[#allocation6 + $0x390] sm:$0xff]
        %v401 = vld [vmem:[#allocation6 + $0x398] sm:$0xff]
        %v402 = vld [vmem:[#allocation6 + $0x3a0] sm:$0xff]
        %v403 = vld [vmem:[#allocation6 + $0x3a8] sm:$0xff]
        %v404 = vld [vmem:[#allocation6 + $0x3b0] sm:$0xff]
        %v405 = vld [vmem:[#allocation6 + $0x3b8] sm:$0xff]
        %v406 = vld [vmem:[#allocation6 + $0x3c0] sm:$0xff]
        %v407 = vld [vmem:[#allocation6 + $0x3c8] sm:$0xff]
        %v408 = vld [vmem:[#allocation6 + $0x3d0] sm:$0xff]
        %v409 = vld [vmem:[#allocation6 + $0x3d8] sm:$0xff]
        %v410 = vld [vmem:[#allocation6 + $0x3e0] sm:$0xff]
        %v411 = vld [vmem:[#allocation6 + $0x3e8] sm:$0xff]
        %v412 = vld [vmem:[#allocation6 + $0x3f0] sm:$0xff]
        %v413 = vld [vmem:[#allocation6 + $0x3f8] sm:$0xff]
        %v422 = vunpack.c.l.b16 %v278
        %v423 = vunpack.c.h.b16 %v278
        %v424 = vunpack.c.l.b16 %v279
        %v425 = vunpack.c.h.b16 %v279
        %v426 = vunpack.c.l.b16 %v280
        %v427 = vunpack.c.h.b16 %v280
        %v428 = vunpack.c.l.b16 %v281
        %v429 = vunpack.c.h.b16 %v281
        %v430 = vunpack.c.l.b16 %v282
        %v431 = vunpack.c.h.b16 %v282
        %v432 = vunpack.c.l.b16 %v283
        %v433 = vunpack.c.h.b16 %v283
        %v434 = vunpack.c.l.b16 %v284
        %v435 = vunpack.c.h.b16 %v284
        %v436 = vunpack.c.l.b16 %v285
        %v437 = vunpack.c.h.b16 %v285
        %v438 = vpack.c.b16 %v424, %v422
        %v439 = vpack.c.b16 %v425, %v423
        %v440 = vpack.c.b16 %v428, %v426
        %v441 = vpack.c.b16 %v429, %v427
        %v442 = vpack.c.b16 %v432, %v430
        %v443 = vpack.c.b16 %v433, %v431
        %v444 = vpack.c.b16 %v436, %v434
        %v445 = vpack.c.b16 %v437, %v435
        %v582 = vunpack.c.l.b16 %v286
        %v583 = vunpack.c.h.b16 %v286
        %v584 = vunpack.c.l.b16 %v287
        %v585 = vunpack.c.h.b16 %v287
        %v586 = vunpack.c.l.b16 %v288
        %v587 = vunpack.c.h.b16 %v288
        %v588 = vunpack.c.l.b16 %v289
        %v589 = vunpack.c.h.b16 %v289
        %v590 = vunpack.c.l.b16 %v290
        %v591 = vunpack.c.h.b16 %v290
        %v592 = vunpack.c.l.b16 %v291
        %v593 = vunpack.c.h.b16 %v291
        %v594 = vunpack.c.l.b16 %v292
        %v595 = vunpack.c.h.b16 %v292
        %v596 = vunpack.c.l.b16 %v293
        %v597 = vunpack.c.h.b16 %v293
        %v598 = vunpack.c.l.b16 %v294
        %v599 = vunpack.c.h.b16 %v294
        %v600 = vunpack.c.l.b16 %v295
        %v601 = vunpack.c.h.b16 %v295
        %v602 = vunpack.c.l.b16 %v296
        %v603 = vunpack.c.h.b16 %v296
        %v604 = vunpack.c.l.b16 %v297
        %v605 = vunpack.c.h.b16 %v297
        %v606 = vunpack.c.l.b16 %v298
        %v607 = vunpack.c.h.b16 %v298
        %v608 = vunpack.c.l.b16 %v299
        %v609 = vunpack.c.h.b16 %v299
        %v610 = vunpack.c.l.b16 %v300
        %v611 = vunpack.c.h.b16 %v300
        %v612 = vunpack.c.l.b16 %v301
        %v613 = vunpack.c.h.b16 %v301
        %v614 = vunpack.c.l.b16 %v302
        %v615 = vunpack.c.h.b16 %v302
        %v616 = vunpack.c.l.b16 %v303
        %v617 = vunpack.c.h.b16 %v303
        %v618 = vunpack.c.l.b16 %v304
        %v619 = vunpack.c.h.b16 %v304
        %v620 = vunpack.c.l.b16 %v305
        %v621 = vunpack.c.h.b16 %v305
        %v622 = vunpack.c.l.b16 %v306
        %v623 = vunpack.c.h.b16 %v306
        %v624 = vunpack.c.l.b16 %v307
        %v625 = vunpack.c.h.b16 %v307
        %v626 = vunpack.c.l.b16 %v308
        %v627 = vunpack.c.h.b16 %v308
        %v628 = vunpack.c.l.b16 %v309
        %v629 = vunpack.c.h.b16 %v309
        %v630 = vunpack.c.l.b16 %v310
        %v631 = vunpack.c.h.b16 %v310
        %v632 = vunpack.c.l.b16 %v311
        %v633 = vunpack.c.h.b16 %v311
        %v634 = vunpack.c.l.b16 %v312
        %v635 = vunpack.c.h.b16 %v312
        %v636 = vunpack.c.l.b16 %v313
        %v637 = vunpack.c.h.b16 %v313
        %v638 = vunpack.c.l.b16 %v314
        %v639 = vunpack.c.h.b16 %v314
        %v640 = vunpack.c.l.b16 %v315
        %v641 = vunpack.c.h.b16 %v315
        %v642 = vunpack.c.l.b16 %v316
        %v643 = vunpack.c.h.b16 %v316
        %v644 = vunpack.c.l.b16 %v317
        %v645 = vunpack.c.h.b16 %v317
        %v646 = vunpack.c.l.b16 %v318
        %v647 = vunpack.c.h.b16 %v318
        %v648 = vunpack.c.l.b16 %v319
        %v649 = vunpack.c.h.b16 %v319
        %v650 = vunpack.c.l.b16 %v320
        %v651 = vunpack.c.h.b16 %v320
        %v652 = vunpack.c.l.b16 %v321
        %v653 = vunpack.c.h.b16 %v321
        %v654 = vunpack.c.l.b16 %v322
        %v655 = vunpack.c.h.b16 %v322
        %v656 = vunpack.c.l.b16 %v323
        %v657 = vunpack.c.h.b16 %v323
        %v658 = vunpack.c.l.b16 %v324
        %v659 = vunpack.c.h.b16 %v324
        %v660 = vunpack.c.l.b16 %v325
        %v661 = vunpack.c.h.b16 %v325
        %v662 = vunpack.c.l.b16 %v326
        %v663 = vunpack.c.h.b16 %v326
        %v664 = vunpack.c.l.b16 %v327
        %v665 = vunpack.c.h.b16 %v327
        %v666 = vunpack.c.l.b16 %v328
        %v667 = vunpack.c.h.b16 %v328
        %v668 = vunpack.c.l.b16 %v329
        %v669 = vunpack.c.h.b16 %v329
        %v670 = vunpack.c.l.b16 %v330
        %v671 = vunpack.c.h.b16 %v330
        %v672 = vunpack.c.l.b16 %v331
        %v673 = vunpack.c.h.b16 %v331
        %v674 = vunpack.c.l.b16 %v332
        %v675 = vunpack.c.h.b16 %v332
        %v676 = vunpack.c.l.b16 %v333
        %v677 = vunpack.c.h.b16 %v333
        %v678 = vunpack.c.l.b16 %v334
        %v679 = vunpack.c.h.b16 %v334
        %v680 = vunpack.c.l.b16 %v335
        %v681 = vunpack.c.h.b16 %v335
        %v682 = vunpack.c.l.b16 %v336
        %v683 = vunpack.c.h.b16 %v336
        %v684 = vunpack.c.l.b16 %v337
        %v685 = vunpack.c.h.b16 %v337
        %v686 = vunpack.c.l.b16 %v338
        %v687 = vunpack.c.h.b16 %v338
        %v688 = vunpack.c.l.b16 %v339
        %v689 = vunpack.c.h.b16 %v339
        %v690 = vunpack.c.l.b16 %v340
        %v691 = vunpack.c.h.b16 %v340
        %v692 = vunpack.c.l.b16 %v341
        %v693 = vunpack.c.h.b16 %v341
        %v694 = vunpack.c.l.b16 %v342
        %v695 = vunpack.c.h.b16 %v342
        %v696 = vunpack.c.l.b16 %v343
        %v697 = vunpack.c.h.b16 %v343
        %v698 = vunpack.c.l.b16 %v344
        %v699 = vunpack.c.h.b16 %v344
        %v700 = vunpack.c.l.b16 %v345
        %v701 = vunpack.c.h.b16 %v345
        %v702 = vunpack.c.l.b16 %v346
        %v703 = vunpack.c.h.b16 %v346
        %v704 = vunpack.c.l.b16 %v347
        %v705 = vunpack.c.h.b16 %v347
        %v706 = vunpack.c.l.b16 %v348
        %v707 = vunpack.c.h.b16 %v348
        %v708 = vunpack.c.l.b16 %v349
        %v709 = vunpack.c.h.b16 %v349
        %v710 = vunpack.c.l.b16 %v350
        %v711 = vunpack.c.h.b16 %v350
        %v712 = vunpack.c.l.b16 %v351
        %v713 = vunpack.c.h.b16 %v351
        %v714 = vunpack.c.l.b16 %v352
        %v715 = vunpack.c.h.b16 %v352
        %v716 = vunpack.c.l.b16 %v353
        %v717 = vunpack.c.h.b16 %v353
        %v718 = vunpack.c.l.b16 %v354
        %v719 = vunpack.c.h.b16 %v354
        %v720 = vunpack.c.l.b16 %v355
        %v721 = vunpack.c.h.b16 %v355
        %v722 = vunpack.c.l.b16 %v356
        %v723 = vunpack.c.h.b16 %v356
        %v724 = vunpack.c.l.b16 %v357
        %v725 = vunpack.c.h.b16 %v357
        %v726 = vunpack.c.l.b16 %v358
        %v727 = vunpack.c.h.b16 %v358
        %v728 = vunpack.c.l.b16 %v359
        %v729 = vunpack.c.h.b16 %v359
        %v730 = vunpack.c.l.b16 %v360
        %v731 = vunpack.c.h.b16 %v360
        %v732 = vunpack.c.l.b16 %v361
        %v733 = vunpack.c.h.b16 %v361
        %v734 = vunpack.c.l.b16 %v362
        %v735 = vunpack.c.h.b16 %v362
        %v736 = vunpack.c.l.b16 %v363
        %v737 = vunpack.c.h.b16 %v363
        %v738 = vunpack.c.l.b16 %v364
        %v739 = vunpack.c.h.b16 %v364
        %v740 = vunpack.c.l.b16 %v365
        %v741 = vunpack.c.h.b16 %v365
        %v742 = vunpack.c.l.b16 %v366
        %v743 = vunpack.c.h.b16 %v366
        %v744 = vunpack.c.l.b16 %v367
        %v745 = vunpack.c.h.b16 %v367
        %v746 = vunpack.c.l.b16 %v368
        %v747 = vunpack.c.h.b16 %v368
        %v748 = vunpack.c.l.b16 %v369
        %v749 = vunpack.c.h.b16 %v369
        %v750 = vunpack.c.l.b16 %v370
        %v751 = vunpack.c.h.b16 %v370
        %v752 = vunpack.c.l.b16 %v371
        %v753 = vunpack.c.h.b16 %v371
        %v754 = vunpack.c.l.b16 %v372
        %v755 = vunpack.c.h.b16 %v372
        %v756 = vunpack.c.l.b16 %v373
        %v757 = vunpack.c.h.b16 %v373
        %v758 = vunpack.c.l.b16 %v374
        %v759 = vunpack.c.h.b16 %v374
        %v760 = vunpack.c.l.b16 %v375
        %v761 = vunpack.c.h.b16 %v375
        %v762 = vunpack.c.l.b16 %v376
        %v763 = vunpack.c.h.b16 %v376
        %v764 = vunpack.c.l.b16 %v377
        %v765 = vunpack.c.h.b16 %v377
        %v766 = vunpack.c.l.b16 %v378
        %v767 = vunpack.c.h.b16 %v378
        %v768 = vunpack.c.l.b16 %v379
        %v769 = vunpack.c.h.b16 %v379
        %v770 = vunpack.c.l.b16 %v380
        %v771 = vunpack.c.h.b16 %v380
        %v772 = vunpack.c.l.b16 %v381
        %v773 = vunpack.c.h.b16 %v381
        %v774 = vunpack.c.l.b16 %v382
        %v775 = vunpack.c.h.b16 %v382
        %v776 = vunpack.c.l.b16 %v383
        %v777 = vunpack.c.h.b16 %v383
        %v778 = vunpack.c.l.b16 %v384
        %v779 = vunpack.c.h.b16 %v384
        %v780 = vunpack.c.l.b16 %v385
        %v781 = vunpack.c.h.b16 %v385
        %v782 = vunpack.c.l.b16 %v386
        %v783 = vunpack.c.h.b16 %v386
        %v784 = vunpack.c.l.b16 %v387
        %v785 = vunpack.c.h.b16 %v387
        %v786 = vunpack.c.l.b16 %v388
        %v787 = vunpack.c.h.b16 %v388
        %v788 = vunpack.c.l.b16 %v389
        %v789 = vunpack.c.h.b16 %v389
        %v790 = vunpack.c.l.b16 %v390
        %v791 = vunpack.c.h.b16 %v390
        %v792 = vunpack.c.l.b16 %v391
        %v793 = vunpack.c.h.b16 %v391
        %v794 = vunpack.c.l.b16 %v392
        %v795 = vunpack.c.h.b16 %v392
        %v796 = vunpack.c.l.b16 %v393
        %v797 = vunpack.c.h.b16 %v393
        %v798 = vunpack.c.l.b16 %v394
        %v799 = vunpack.c.h.b16 %v394
        %v800 = vunpack.c.l.b16 %v395
        %v801 = vunpack.c.h.b16 %v395
        %v802 = vunpack.c.l.b16 %v396
        %v803 = vunpack.c.h.b16 %v396
        %v804 = vunpack.c.l.b16 %v397
        %v805 = vunpack.c.h.b16 %v397
        %v806 = vunpack.c.l.b16 %v398
        %v807 = vunpack.c.h.b16 %v398
        %v808 = vunpack.c.l.b16 %v399
        %v809 = vunpack.c.h.b16 %v399
        %v810 = vunpack.c.l.b16 %v400
        %v811 = vunpack.c.h.b16 %v400
        %v812 = vunpack.c.l.b16 %v401
        %v813 = vunpack.c.h.b16 %v401
        %v814 = vunpack.c.l.b16 %v402
        %v815 = vunpack.c.h.b16 %v402
        %v816 = vunpack.c.l.b16 %v403
        %v817 = vunpack.c.h.b16 %v403
        %v818 = vunpack.c.l.b16 %v404
        %v819 = vunpack.c.h.b16 %v404
        %v820 = vunpack.c.l.b16 %v405
        %v821 = vunpack.c.h.b16 %v405
        %v822 = vunpack.c.l.b16 %v406
        %v823 = vunpack.c.h.b16 %v406
        %v824 = vunpack.c.l.b16 %v407
        %v825 = vunpack.c.h.b16 %v407
        %v826 = vunpack.c.l.b16 %v408
        %v827 = vunpack.c.h.b16 %v408
        %v828 = vunpack.c.l.b16 %v409
        %v829 = vunpack.c.h.b16 %v409
        %v830 = vunpack.c.l.b16 %v410
        %v831 = vunpack.c.h.b16 %v410
        %v832 = vunpack.c.l.b16 %v411
        %v833 = vunpack.c.h.b16 %v411
        %v834 = vunpack.c.l.b16 %v412
        %v835 = vunpack.c.h.b16 %v412
        %v836 = vunpack.c.l.b16 %v413
        %v837 = vunpack.c.h.b16 %v413
        %v838 = vpack.c.b16 %v590, %v582
        %v839 = vpack.c.b16 %v591, %v583
        %v840 = vpack.c.b16 %v592, %v584
        %v841 = vpack.c.b16 %v593, %v585
        %v842 = vpack.c.b16 %v594, %v586
        %v843 = vpack.c.b16 %v595, %v587
        %v844 = vpack.c.b16 %v596, %v588
        %v845 = vpack.c.b16 %v597, %v589
        %v846 = vpack.c.b16 %v606, %v598
        %v847 = vpack.c.b16 %v607, %v599
        %v848 = vpack.c.b16 %v608, %v600
        %v849 = vpack.c.b16 %v609, %v601
        %v850 = vpack.c.b16 %v610, %v602
        %v851 = vpack.c.b16 %v611, %v603
        %v852 = vpack.c.b16 %v612, %v604
        %v853 = vpack.c.b16 %v613, %v605
        %v854 = vpack.c.b16 %v622, %v614
        %v855 = vpack.c.b16 %v623, %v615
        %v856 = vpack.c.b16 %v624, %v616
        %v857 = vpack.c.b16 %v625, %v617
        %v858 = vpack.c.b16 %v626, %v618
        %v859 = vpack.c.b16 %v627, %v619
        %v860 = vpack.c.b16 %v628, %v620
        %v861 = vpack.c.b16 %v629, %v621
        %v862 = vpack.c.b16 %v638, %v630
        %v863 = vpack.c.b16 %v639, %v631
        %v864 = vpack.c.b16 %v640, %v632
        %v865 = vpack.c.b16 %v641, %v633
        %v866 = vpack.c.b16 %v642, %v634
        %v867 = vpack.c.b16 %v643, %v635
        %v868 = vpack.c.b16 %v644, %v636
        %v869 = vpack.c.b16 %v645, %v637
        %v870 = vpack.c.b16 %v654, %v646
        %v871 = vpack.c.b16 %v655, %v647
        %v872 = vpack.c.b16 %v656, %v648
        %v873 = vpack.c.b16 %v657, %v649
        %v874 = vpack.c.b16 %v658, %v650
        %v875 = vpack.c.b16 %v659, %v651
        %v876 = vpack.c.b16 %v660, %v652
        %v877 = vpack.c.b16 %v661, %v653
        %v878 = vpack.c.b16 %v670, %v662
        %v879 = vpack.c.b16 %v671, %v663
        %v880 = vpack.c.b16 %v672, %v664
        %v881 = vpack.c.b16 %v673, %v665
        %v882 = vpack.c.b16 %v674, %v666
        %v883 = vpack.c.b16 %v675, %v667
        %v884 = vpack.c.b16 %v676, %v668
        %v885 = vpack.c.b16 %v677, %v669
        %v886 = vpack.c.b16 %v686, %v678
        %v887 = vpack.c.b16 %v687, %v679
        %v888 = vpack.c.b16 %v688, %v680
        %v889 = vpack.c.b16 %v689, %v681
        %v890 = vpack.c.b16 %v690, %v682
        %v891 = vpack.c.b16 %v691, %v683
        %v892 = vpack.c.b16 %v692, %v684
        %v893 = vpack.c.b16 %v693, %v685
        %v894 = vpack.c.b16 %v702, %v694
        %v895 = vpack.c.b16 %v703, %v695
        %v896 = vpack.c.b16 %v704, %v696
        %v897 = vpack.c.b16 %v705, %v697
        %v898 = vpack.c.b16 %v706, %v698
        %v899 = vpack.c.b16 %v707, %v699
        %v900 = vpack.c.b16 %v708, %v700
        %v901 = vpack.c.b16 %v709, %v701
        %v902 = vpack.c.b16 %v718, %v710
        %v903 = vpack.c.b16 %v719, %v711
        %v904 = vpack.c.b16 %v720, %v712
        %v905 = vpack.c.b16 %v721, %v713
        %v906 = vpack.c.b16 %v722, %v714
        %v907 = vpack.c.b16 %v723, %v715
        %v908 = vpack.c.b16 %v724, %v716
        %v909 = vpack.c.b16 %v725, %v717
        %v910 = vpack.c.b16 %v734, %v726
        %v911 = vpack.c.b16 %v735, %v727
        %v912 = vpack.c.b16 %v736, %v728
        %v913 = vpack.c.b16 %v737, %v729
        %v914 = vpack.c.b16 %v738, %v730
        %v915 = vpack.c.b16 %v739, %v731
        %v916 = vpack.c.b16 %v740, %v732
        %v917 = vpack.c.b16 %v741, %v733
        %v918 = vpack.c.b16 %v750, %v742
        %v919 = vpack.c.b16 %v751, %v743
        %v920 = vpack.c.b16 %v752, %v744
        %v921 = vpack.c.b16 %v753, %v745
        %v922 = vpack.c.b16 %v754, %v746
        %v923 = vpack.c.b16 %v755, %v747
        %v924 = vpack.c.b16 %v756, %v748
        %v925 = vpack.c.b16 %v757, %v749
        %v926 = vpack.c.b16 %v766, %v758
        %v927 = vpack.c.b16 %v767, %v759
        %v928 = vpack.c.b16 %v768, %v760
        %v929 = vpack.c.b16 %v769, %v761
        %v930 = vpack.c.b16 %v770, %v762
        %v931 = vpack.c.b16 %v771, %v763
        %v932 = vpack.c.b16 %v772, %v764
        %v933 = vpack.c.b16 %v773, %v765
        %v934 = vpack.c.b16 %v782, %v774
        %v935 = vpack.c.b16 %v783, %v775
        %v936 = vpack.c.b16 %v784, %v776
        %v937 = vpack.c.b16 %v785, %v777
        %v938 = vpack.c.b16 %v786, %v778
        %v939 = vpack.c.b16 %v787, %v779
        %v940 = vpack.c.b16 %v788, %v780
        %v941 = vpack.c.b16 %v789, %v781
        %v942 = vpack.c.b16 %v798, %v790
        %v943 = vpack.c.b16 %v799, %v791
        %v944 = vpack.c.b16 %v800, %v792
        %v945 = vpack.c.b16 %v801, %v793
        %v946 = vpack.c.b16 %v802, %v794
        %v947 = vpack.c.b16 %v803, %v795
        %v948 = vpack.c.b16 %v804, %v796
        %v949 = vpack.c.b16 %v805, %v797
        %v950 = vpack.c.b16 %v814, %v806
        %v951 = vpack.c.b16 %v815, %v807
        %v952 = vpack.c.b16 %v816, %v808
        %v953 = vpack.c.b16 %v817, %v809
        %v954 = vpack.c.b16 %v818, %v810
        %v955 = vpack.c.b16 %v819, %v811
        %v956 = vpack.c.b16 %v820, %v812
        %v957 = vpack.c.b16 %v821, %v813
        %v958 = vpack.c.b16 %v830, %v822
        %v959 = vpack.c.b16 %v831, %v823
        %v960 = vpack.c.b16 %v832, %v824
        %v961 = vpack.c.b16 %v833, %v825
        %v962 = vpack.c.b16 %v834, %v826
        %v963 = vpack.c.b16 %v835, %v827
        %v964 = vpack.c.b16 %v836, %v828
        %v965 = vpack.c.b16 %v837, %v829
        %1094 = vmatpush.bf16.msra.mxu0 %v894
        %1095 = vmatpush.bf16.msra.mxu0 %v886
        %1096 = vmatpush.bf16.msra.mxu0 %v878
        %1097 = vmatpush.bf16.msra.mxu0 %v870
        %1098 = vmatpush.bf16.msra.mxu0 %v862
        %1099 = vmatpush.bf16.msra.mxu0 %v854
        %1100 = vmatpush.bf16.msra.mxu0 %v846
        %1101 = vmatpush.bf16.msra.mxu0 %v838
        %1102 = vmatmul.bf16.gmra.mxu0 %v438
        %v1103 = vpop.f32.mrf.mxu0
        %v1104 = vadd.f32 0.0, %v1103
        %v1105 = vpop.f32.mrf.mxu0
        %v1106 = vadd.f32 0.0, %v1105
        %1107 = vmatmul.bf16.gmra.mxu0 %v440
        %v1108 = vpop.f32.mrf.mxu0
        %v1109 = vadd.f32 0.0, %v1108
        %v1110 = vpop.f32.mrf.mxu0
        %v1111 = vadd.f32 0.0, %v1110
        %1112 = vmatmul.bf16.gmra.mxu0 %v442
        %v1113 = vpop.f32.mrf.mxu0
        %v1114 = vadd.f32 0.0, %v1113
        %v1115 = vpop.f32.mrf.mxu0
        %v1116 = vadd.f32 0.0, %v1115
        %1117 = vmatmul.bf16.gmra.mxu0 %v444
        %v1118 = vpop.f32.mrf.mxu0
        %v1119 = vadd.f32 0.0, %v1118
        %v1120 = vpop.f32.mrf.mxu0
        %v1121 = vadd.f32 0.0, %v1120
        %1122 = vdwg.mxu0
        %1123 = vmatpush.bf16.msra.mxu0 %v958
        %1124 = vmatpush.bf16.msra.mxu0 %v950
        %1125 = vmatpush.bf16.msra.mxu0 %v942
        %1126 = vmatpush.bf16.msra.mxu0 %v934
        %1127 = vmatpush.bf16.msra.mxu0 %v926
        %1128 = vmatpush.bf16.msra.mxu0 %v918
        %1129 = vmatpush.bf16.msra.mxu0 %v910
        %1130 = vmatpush.bf16.msra.mxu0 %v902
        %1131 = vmatmul.bf16.gmra.mxu0 %v439
        %v1132 = vpop.f32.mrf.mxu0
        %v1133 = vadd.f32 %v1104, %v1132
        %v1134 = vpop.f32.mrf.mxu0
        %v1135 = vadd.f32 %v1106, %v1134
        %1136 = vmatmul.bf16.gmra.mxu0 %v441
        %v1137 = vpop.f32.mrf.mxu0
        %v1138 = vadd.f32 %v1109, %v1137
        %v1139 = vpop.f32.mrf.mxu0
        %v1140 = vadd.f32 %v1111, %v1139
        %1141 = vmatmul.bf16.gmra.mxu0 %v443
        %v1142 = vpop.f32.mrf.mxu0
        %v1143 = vadd.f32 %v1114, %v1142
        %v1144 = vpop.f32.mrf.mxu0
        %v1145 = vadd.f32 %v1116, %v1144
        %1146 = vmatmul.bf16.gmra.mxu0 %v445
        %v1147 = vpop.f32.mrf.mxu0
        %v1148 = vadd.f32 %v1119, %v1147
        %v1149 = vpop.f32.mrf.mxu0
        %v1150 = vadd.f32 %v1121, %v1149
        %1151 = vdwg.mxu0
        %1152 = vmatpush.bf16.msra.mxu0 %v895
        %1153 = vmatpush.bf16.msra.mxu0 %v887
        %1154 = vmatpush.bf16.msra.mxu0 %v879
        %1155 = vmatpush.bf16.msra.mxu0 %v871
        %1156 = vmatpush.bf16.msra.mxu0 %v863
        %1157 = vmatpush.bf16.msra.mxu0 %v855
        %1158 = vmatpush.bf16.msra.mxu0 %v847
        %1159 = vmatpush.bf16.msra.mxu0 %v839
        %1160 = vmatmul.bf16.gmra.mxu0 %v438
        %v1161 = vpop.f32.mrf.mxu0
        %v1162 = vadd.f32 0.0, %v1161
        %v1163 = vpop.f32.mrf.mxu0
        %v1164 = vadd.f32 0.0, %v1163
        %1165 = vmatmul.bf16.gmra.mxu0 %v440
        %v1166 = vpop.f32.mrf.mxu0
        %v1167 = vadd.f32 0.0, %v1166
        %v1168 = vpop.f32.mrf.mxu0
        %v1169 = vadd.f32 0.0, %v1168
        %1170 = vmatmul.bf16.gmra.mxu0 %v442
        %v1171 = vpop.f32.mrf.mxu0
        %v1172 = vadd.f32 0.0, %v1171
        %v1173 = vpop.f32.mrf.mxu0
        %v1174 = vadd.f32 0.0, %v1173
        %1175 = vmatmul.bf16.gmra.mxu0 %v444
        %v1176 = vpop.f32.mrf.mxu0
        %v1177 = vadd.f32 0.0, %v1176
        %v1178 = vpop.f32.mrf.mxu0
        %v1179 = vadd.f32 0.0, %v1178
        %1180 = vdwg.mxu0
        %1181 = vmatpush.bf16.msra.mxu0 %v959
        %1182 = vmatpush.bf16.msra.mxu0 %v951
        %1183 = vmatpush.bf16.msra.mxu0 %v943
        %1184 = vmatpush.bf16.msra.mxu0 %v935
        %1185 = vmatpush.bf16.msra.mxu0 %v927
        %1186 = vmatpush.bf16.msra.mxu0 %v919
        %1187 = vmatpush.bf16.msra.mxu0 %v911
        %1188 = vmatpush.bf16.msra.mxu0 %v903
        %1189 = vmatmul.bf16.gmra.mxu0 %v439
        %v1190 = vpop.f32.mrf.mxu0
        %v1191 = vadd.f32 %v1162, %v1190
        %v1192 = vpop.f32.mrf.mxu0
        %v1193 = vadd.f32 %v1164, %v1192
        %1194 = vmatmul.bf16.gmra.mxu0 %v441
        %v1195 = vpop.f32.mrf.mxu0
        %v1196 = vadd.f32 %v1167, %v1195
        %v1197 = vpop.f32.mrf.mxu0
        %v1198 = vadd.f32 %v1169, %v1197
        %1199 = vmatmul.bf16.gmra.mxu0 %v443
        %v1200 = vpop.f32.mrf.mxu0
        %v1201 = vadd.f32 %v1172, %v1200
        %v1202 = vpop.f32.mrf.mxu0
        %v1203 = vadd.f32 %v1174, %v1202
        %1204 = vmatmul.bf16.gmra.mxu0 %v445
        %v1205 = vpop.f32.mrf.mxu0
        %v1206 = vadd.f32 %v1177, %v1205
        %v1207 = vpop.f32.mrf.mxu0
        %v1208 = vadd.f32 %v1179, %v1207
        %1209 = vdwg.mxu0
        %1210 = vmatpush.bf16.msra.mxu0 %v896
        %1211 = vmatpush.bf16.msra.mxu0 %v888
        %1212 = vmatpush.bf16.msra.mxu0 %v880
        %1213 = vmatpush.bf16.msra.mxu0 %v872
        %1214 = vmatpush.bf16.msra.mxu0 %v864
        %1215 = vmatpush.bf16.msra.mxu0 %v856
        %1216 = vmatpush.bf16.msra.mxu0 %v848
        %1217 = vmatpush.bf16.msra.mxu0 %v840
        %1218 = vmatmul.bf16.gmra.mxu0 %v438
        %v1219 = vpop.f32.mrf.mxu0
        %v1220 = vadd.f32 0.0, %v1219
        %v1221 = vpop.f32.mrf.mxu0
        %v1222 = vadd.f32 0.0, %v1221
        %1223 = vmatmul.bf16.gmra.mxu0 %v440
        %v1224 = vpop.f32.mrf.mxu0
        %v1225 = vadd.f32 0.0, %v1224
        %v1226 = vpop.f32.mrf.mxu0
        %v1227 = vadd.f32 0.0, %v1226
        %1228 = vmatmul.bf16.gmra.mxu0 %v442
        %v1229 = vpop.f32.mrf.mxu0
        %v1230 = vadd.f32 0.0, %v1229
        %v1231 = vpop.f32.mrf.mxu0
        %v1232 = vadd.f32 0.0, %v1231
        %1233 = vmatmul.bf16.gmra.mxu0 %v444
        %v1234 = vpop.f32.mrf.mxu0
        %v1235 = vadd.f32 0.0, %v1234
        %v1236 = vpop.f32.mrf.mxu0
        %v1237 = vadd.f32 0.0, %v1236
        %1238 = vdwg.mxu0
        %1239 = vmatpush.bf16.msra.mxu0 %v960
        %1240 = vmatpush.bf16.msra.mxu0 %v952
        %1241 = vmatpush.bf16.msra.mxu0 %v944
        %1242 = vmatpush.bf16.msra.mxu0 %v936
        %1243 = vmatpush.bf16.msra.mxu0 %v928
        %1244 = vmatpush.bf16.msra.mxu0 %v920
        %1245 = vmatpush.bf16.msra.mxu0 %v912
        %1246 = vmatpush.bf16.msra.mxu0 %v904
        %1247 = vmatmul.bf16.gmra.mxu0 %v439
        %v1248 = vpop.f32.mrf.mxu0
        %v1249 = vadd.f32 %v1220, %v1248
        %v1250 = vpop.f32.mrf.mxu0
        %v1251 = vadd.f32 %v1222, %v1250
        %1252 = vmatmul.bf16.gmra.mxu0 %v441
        %v1253 = vpop.f32.mrf.mxu0
        %v1254 = vadd.f32 %v1225, %v1253
        %v1255 = vpop.f32.mrf.mxu0
        %v1256 = vadd.f32 %v1227, %v1255
        %1257 = vmatmul.bf16.gmra.mxu0 %v443
        %v1258 = vpop.f32.mrf.mxu0
        %v1259 = vadd.f32 %v1230, %v1258
        %v1260 = vpop.f32.mrf.mxu0
        %v1261 = vadd.f32 %v1232, %v1260
        %1262 = vmatmul.bf16.gmra.mxu0 %v445
        %v1263 = vpop.f32.mrf.mxu0
        %v1264 = vadd.f32 %v1235, %v1263
        %v1265 = vpop.f32.mrf.mxu0
        %v1266 = vadd.f32 %v1237, %v1265
        %1267 = vdwg.mxu0
        %1268 = vmatpush.bf16.msra.mxu0 %v897
        %1269 = vmatpush.bf16.msra.mxu0 %v889
        %1270 = vmatpush.bf16.msra.mxu0 %v881
        %1271 = vmatpush.bf16.msra.mxu0 %v873
        %1272 = vmatpush.bf16.msra.mxu0 %v865
        %1273 = vmatpush.bf16.msra.mxu0 %v857
        %1274 = vmatpush.bf16.msra.mxu0 %v849
        %1275 = vmatpush.bf16.msra.mxu0 %v841
        %1276 = vmatmul.bf16.gmra.mxu0 %v438
        %v1277 = vpop.f32.mrf.mxu0
        %v1278 = vadd.f32 0.0, %v1277
        %v1279 = vpop.f32.mrf.mxu0
        %v1280 = vadd.f32 0.0, %v1279
        %1281 = vmatmul.bf16.gmra.mxu0 %v440
        %v1282 = vpop.f32.mrf.mxu0
        %v1283 = vadd.f32 0.0, %v1282
        %v1284 = vpop.f32.mrf.mxu0
        %v1285 = vadd.f32 0.0, %v1284
        %1286 = vmatmul.bf16.gmra.mxu0 %v442
        %v1287 = vpop.f32.mrf.mxu0
        %v1288 = vadd.f32 0.0, %v1287
        %v1289 = vpop.f32.mrf.mxu0
        %v1290 = vadd.f32 0.0, %v1289
        %1291 = vmatmul.bf16.gmra.mxu0 %v444
        %v1292 = vpop.f32.mrf.mxu0
        %v1293 = vadd.f32 0.0, %v1292
        %v1294 = vpop.f32.mrf.mxu0
        %v1295 = vadd.f32 0.0, %v1294
        %1296 = vdwg.mxu0
        %1297 = vmatpush.bf16.msra.mxu0 %v961
        %1298 = vmatpush.bf16.msra.mxu0 %v953
        %1299 = vmatpush.bf16.msra.mxu0 %v945
        %1300 = vmatpush.bf16.msra.mxu0 %v937
        %1301 = vmatpush.bf16.msra.mxu0 %v929
        %1302 = vmatpush.bf16.msra.mxu0 %v921
        %1303 = vmatpush.bf16.msra.mxu0 %v913
        %1304 = vmatpush.bf16.msra.mxu0 %v905
        %1305 = vmatmul.bf16.gmra.mxu0 %v439
        %v1306 = vpop.f32.mrf.mxu0
        %v1307 = vadd.f32 %v1278, %v1306
        %v1308 = vpop.f32.mrf.mxu0
        %v1309 = vadd.f32 %v1280, %v1308
        %1310 = vmatmul.bf16.gmra.mxu0 %v441
        %v1311 = vpop.f32.mrf.mxu0
        %v1312 = vadd.f32 %v1283, %v1311
        %v1313 = vpop.f32.mrf.mxu0
        %v1314 = vadd.f32 %v1285, %v1313
        %1315 = vmatmul.bf16.gmra.mxu0 %v443
        %v1316 = vpop.f32.mrf.mxu0
        %v1317 = vadd.f32 %v1288, %v1316
        %v1318 = vpop.f32.mrf.mxu0
        %v1319 = vadd.f32 %v1290, %v1318
        %1320 = vmatmul.bf16.gmra.mxu0 %v445
        %v1321 = vpop.f32.mrf.mxu0
        %v1322 = vadd.f32 %v1293, %v1321
        %v1323 = vpop.f32.mrf.mxu0
        %v1324 = vadd.f32 %v1295, %v1323
        %1325 = vdwg.mxu0
        %1326 = vmatpush.bf16.msra.mxu0 %v898
        %1327 = vmatpush.bf16.msra.mxu0 %v890
        %1328 = vmatpush.bf16.msra.mxu0 %v882
        %1329 = vmatpush.bf16.msra.mxu0 %v874
        %1330 = vmatpush.bf16.msra.mxu0 %v866
        %1331 = vmatpush.bf16.msra.mxu0 %v858
        %1332 = vmatpush.bf16.msra.mxu0 %v850
        %1333 = vmatpush.bf16.msra.mxu0 %v842
        %1334 = vmatmul.bf16.gmra.mxu0 %v438
        %v1335 = vpop.f32.mrf.mxu0
        %v1336 = vadd.f32 0.0, %v1335
        %v1337 = vpop.f32.mrf.mxu0
        %v1338 = vadd.f32 0.0, %v1337
        %1339 = vmatmul.bf16.gmra.mxu0 %v440
        %v1340 = vpop.f32.mrf.mxu0
        %v1341 = vadd.f32 0.0, %v1340
        %v1342 = vpop.f32.mrf.mxu0
        %v1343 = vadd.f32 0.0, %v1342
        %1344 = vmatmul.bf16.gmra.mxu0 %v442
        %v1345 = vpop.f32.mrf.mxu0
        %v1346 = vadd.f32 0.0, %v1345
        %v1347 = vpop.f32.mrf.mxu0
        %v1348 = vadd.f32 0.0, %v1347
        %1349 = vmatmul.bf16.gmra.mxu0 %v444
        %v1350 = vpop.f32.mrf.mxu0
        %v1351 = vadd.f32 0.0, %v1350
        %v1352 = vpop.f32.mrf.mxu0
        %v1353 = vadd.f32 0.0, %v1352
        %1354 = vdwg.mxu0
        %1355 = vmatpush.bf16.msra.mxu0 %v962
        %1356 = vmatpush.bf16.msra.mxu0 %v954
        %1357 = vmatpush.bf16.msra.mxu0 %v946
        %1358 = vmatpush.bf16.msra.mxu0 %v938
        %1359 = vmatpush.bf16.msra.mxu0 %v930
        %1360 = vmatpush.bf16.msra.mxu0 %v922
        %1361 = vmatpush.bf16.msra.mxu0 %v914
        %1362 = vmatpush.bf16.msra.mxu0 %v906
        %1363 = vmatmul.bf16.gmra.mxu0 %v439
        %v1364 = vpop.f32.mrf.mxu0
        %v1365 = vadd.f32 %v1336, %v1364
        %v1366 = vpop.f32.mrf.mxu0
        %v1367 = vadd.f32 %v1338, %v1366
        %1368 = vmatmul.bf16.gmra.mxu0 %v441
        %v1369 = vpop.f32.mrf.mxu0
        %v1370 = vadd.f32 %v1341, %v1369
        %v1371 = vpop.f32.mrf.mxu0
        %v1372 = vadd.f32 %v1343, %v1371
        %1373 = vmatmul.bf16.gmra.mxu0 %v443
        %v1374 = vpop.f32.mrf.mxu0
        %v1375 = vadd.f32 %v1346, %v1374
        %v1376 = vpop.f32.mrf.mxu0
        %v1377 = vadd.f32 %v1348, %v1376
        %1378 = vmatmul.bf16.gmra.mxu0 %v445
        %v1379 = vpop.f32.mrf.mxu0
        %v1380 = vadd.f32 %v1351, %v1379
        %v1381 = vpop.f32.mrf.mxu0
        %v1382 = vadd.f32 %v1353, %v1381
        %1383 = vdwg.mxu0
        %1384 = vmatpush.bf16.msra.mxu0 %v899
        %1385 = vmatpush.bf16.msra.mxu0 %v891
        %1386 = vmatpush.bf16.msra.mxu0 %v883
        %1387 = vmatpush.bf16.msra.mxu0 %v875
        %1388 = vmatpush.bf16.msra.mxu0 %v867
        %1389 = vmatpush.bf16.msra.mxu0 %v859
        %1390 = vmatpush.bf16.msra.mxu0 %v851
        %1391 = vmatpush.bf16.msra.mxu0 %v843
        %1392 = vmatmul.bf16.gmra.mxu0 %v438
        %v1393 = vpop.f32.mrf.mxu0
        %v1394 = vadd.f32 0.0, %v1393
        %v1395 = vpop.f32.mrf.mxu0
        %v1396 = vadd.f32 0.0, %v1395
        %1397 = vmatmul.bf16.gmra.mxu0 %v440
        %v1398 = vpop.f32.mrf.mxu0
        %v1399 = vadd.f32 0.0, %v1398
        %v1400 = vpop.f32.mrf.mxu0
        %v1401 = vadd.f32 0.0, %v1400
        %1402 = vmatmul.bf16.gmra.mxu0 %v442
        %v1403 = vpop.f32.mrf.mxu0
        %v1404 = vadd.f32 0.0, %v1403
        %v1405 = vpop.f32.mrf.mxu0
        %v1406 = vadd.f32 0.0, %v1405
        %1407 = vmatmul.bf16.gmra.mxu0 %v444
        %v1408 = vpop.f32.mrf.mxu0
        %v1409 = vadd.f32 0.0, %v1408
        %v1410 = vpop.f32.mrf.mxu0
        %v1411 = vadd.f32 0.0, %v1410
        %1412 = vdwg.mxu0
        %1413 = vmatpush.bf16.msra.mxu0 %v963
        %1414 = vmatpush.bf16.msra.mxu0 %v955
        %1415 = vmatpush.bf16.msra.mxu0 %v947
        %1416 = vmatpush.bf16.msra.mxu0 %v939
        %1417 = vmatpush.bf16.msra.mxu0 %v931
        %1418 = vmatpush.bf16.msra.mxu0 %v923
        %1419 = vmatpush.bf16.msra.mxu0 %v915
        %1420 = vmatpush.bf16.msra.mxu0 %v907
        %1421 = vmatmul.bf16.gmra.mxu0 %v439
        %v1422 = vpop.f32.mrf.mxu0
        %v1423 = vadd.f32 %v1394, %v1422
        %v1424 = vpop.f32.mrf.mxu0
        %v1425 = vadd.f32 %v1396, %v1424
        %1426 = vmatmul.bf16.gmra.mxu0 %v441
        %v1427 = vpop.f32.mrf.mxu0
        %v1428 = vadd.f32 %v1399, %v1427
        %v1429 = vpop.f32.mrf.mxu0
        %v1430 = vadd.f32 %v1401, %v1429
        %1431 = vmatmul.bf16.gmra.mxu0 %v443
        %v1432 = vpop.f32.mrf.mxu0
        %v1433 = vadd.f32 %v1404, %v1432
        %v1434 = vpop.f32.mrf.mxu0
        %v1435 = vadd.f32 %v1406, %v1434
        %1436 = vmatmul.bf16.gmra.mxu0 %v445
        %v1437 = vpop.f32.mrf.mxu0
        %v1438 = vadd.f32 %v1409, %v1437
        %v1439 = vpop.f32.mrf.mxu0
        %v1440 = vadd.f32 %v1411, %v1439
        %1441 = vdwg.mxu0
        %1442 = vmatpush.bf16.msra.mxu0 %v900
        %1443 = vmatpush.bf16.msra.mxu0 %v892
        %1444 = vmatpush.bf16.msra.mxu0 %v884
        %1445 = vmatpush.bf16.msra.mxu0 %v876
        %1446 = vmatpush.bf16.msra.mxu0 %v868
        %1447 = vmatpush.bf16.msra.mxu0 %v860
        %1448 = vmatpush.bf16.msra.mxu0 %v852
        %1449 = vmatpush.bf16.msra.mxu0 %v844
        %1450 = vmatmul.bf16.gmra.mxu0 %v438
        %v1451 = vpop.f32.mrf.mxu0
        %v1452 = vadd.f32 0.0, %v1451
        %v1453 = vpop.f32.mrf.mxu0
        %v1454 = vadd.f32 0.0, %v1453
        %1455 = vmatmul.bf16.gmra.mxu0 %v440
        %v1456 = vpop.f32.mrf.mxu0
        %v1457 = vadd.f32 0.0, %v1456
        %v1458 = vpop.f32.mrf.mxu0
        %v1459 = vadd.f32 0.0, %v1458
        %1460 = vmatmul.bf16.gmra.mxu0 %v442
        %v1461 = vpop.f32.mrf.mxu0
        %v1462 = vadd.f32 0.0, %v1461
        %v1463 = vpop.f32.mrf.mxu0
        %v1464 = vadd.f32 0.0, %v1463
        %1465 = vmatmul.bf16.gmra.mxu0 %v444
        %v1466 = vpop.f32.mrf.mxu0
        %v1467 = vadd.f32 0.0, %v1466
        %v1468 = vpop.f32.mrf.mxu0
        %v1469 = vadd.f32 0.0, %v1468
        %1470 = vdwg.mxu0
        %1471 = vmatpush.bf16.msra.mxu0 %v964
        %1472 = vmatpush.bf16.msra.mxu0 %v956
        %1473 = vmatpush.bf16.msra.mxu0 %v948
        %1474 = vmatpush.bf16.msra.mxu0 %v940
        %1475 = vmatpush.bf16.msra.mxu0 %v932
        %1476 = vmatpush.bf16.msra.mxu0 %v924
        %1477 = vmatpush.bf16.msra.mxu0 %v916
        %1478 = vmatpush.bf16.msra.mxu0 %v908
        %1479 = vmatmul.bf16.gmra.mxu0 %v439
        %v1480 = vpop.f32.mrf.mxu0
        %v1481 = vadd.f32 %v1452, %v1480
        %v1482 = vpop.f32.mrf.mxu0
        %v1483 = vadd.f32 %v1454, %v1482
        %1484 = vmatmul.bf16.gmra.mxu0 %v441
        %v1485 = vpop.f32.mrf.mxu0
        %v1486 = vadd.f32 %v1457, %v1485
        %v1487 = vpop.f32.mrf.mxu0
        %v1488 = vadd.f32 %v1459, %v1487
        %1489 = vmatmul.bf16.gmra.mxu0 %v443
        %v1490 = vpop.f32.mrf.mxu0
        %v1491 = vadd.f32 %v1462, %v1490
        %v1492 = vpop.f32.mrf.mxu0
        %v1493 = vadd.f32 %v1464, %v1492
        %1494 = vmatmul.bf16.gmra.mxu0 %v445
        %v1495 = vpop.f32.mrf.mxu0
        %v1496 = vadd.f32 %v1467, %v1495
        %v1497 = vpop.f32.mrf.mxu0
        %v1498 = vadd.f32 %v1469, %v1497
        %1499 = vdwg.mxu0
        %1500 = vmatpush.bf16.msra.mxu0 %v901
        %1501 = vmatpush.bf16.msra.mxu0 %v893
        %1502 = vmatpush.bf16.msra.mxu0 %v885
        %1503 = vmatpush.bf16.msra.mxu0 %v877
        %1504 = vmatpush.bf16.msra.mxu0 %v869
        %1505 = vmatpush.bf16.msra.mxu0 %v861
        %1506 = vmatpush.bf16.msra.mxu0 %v853
        %1507 = vmatpush.bf16.msra.mxu0 %v845
        %1508 = vmatmul.bf16.gmra.mxu0 %v438
        %v1509 = vpop.f32.mrf.mxu0
        %v1510 = vadd.f32 0.0, %v1509
        %v1511 = vpop.f32.mrf.mxu0
        %v1512 = vadd.f32 0.0, %v1511
        %1513 = vmatmul.bf16.gmra.mxu0 %v440
        %v1514 = vpop.f32.mrf.mxu0
        %v1515 = vadd.f32 0.0, %v1514
        %v1516 = vpop.f32.mrf.mxu0
        %v1517 = vadd.f32 0.0, %v1516
        %1518 = vmatmul.bf16.gmra.mxu0 %v442
        %v1519 = vpop.f32.mrf.mxu0
        %v1520 = vadd.f32 0.0, %v1519
        %v1521 = vpop.f32.mrf.mxu0
        %v1522 = vadd.f32 0.0, %v1521
        %1523 = vmatmul.bf16.gmra.mxu0 %v444
        %v1524 = vpop.f32.mrf.mxu0
        %v1525 = vadd.f32 0.0, %v1524
        %v1526 = vpop.f32.mrf.mxu0
        %v1527 = vadd.f32 0.0, %v1526
        %1528 = vdwg.mxu0
        %1529 = vmatpush.bf16.msra.mxu0 %v965
        %1530 = vmatpush.bf16.msra.mxu0 %v957
        %1531 = vmatpush.bf16.msra.mxu0 %v949
        %1532 = vmatpush.bf16.msra.mxu0 %v941
        %1533 = vmatpush.bf16.msra.mxu0 %v933
        %1534 = vmatpush.bf16.msra.mxu0 %v925
        %1535 = vmatpush.bf16.msra.mxu0 %v917
        %1536 = vmatpush.bf16.msra.mxu0 %v909
        %1537 = vmatmul.bf16.gmra.mxu0 %v439
        %v1538 = vpop.f32.mrf.mxu0
        %v1539 = vadd.f32 %v1510, %v1538
        %v1540 = vpop.f32.mrf.mxu0
        %v1541 = vadd.f32 %v1512, %v1540
        %1542 = vmatmul.bf16.gmra.mxu0 %v441
        %v1543 = vpop.f32.mrf.mxu0
        %v1544 = vadd.f32 %v1515, %v1543
        %v1545 = vpop.f32.mrf.mxu0
        %v1546 = vadd.f32 %v1517, %v1545
        %1547 = vmatmul.bf16.gmra.mxu0 %v443
        %v1548 = vpop.f32.mrf.mxu0
        %v1549 = vadd.f32 %v1520, %v1548
        %v1550 = vpop.f32.mrf.mxu0
        %v1551 = vadd.f32 %v1522, %v1550
        %1552 = vmatmul.bf16.gmra.mxu0 %v445
        %v1553 = vpop.f32.mrf.mxu0
        %v1554 = vadd.f32 %v1525, %v1553
        %v1555 = vpop.f32.mrf.mxu0
        %v1556 = vadd.f32 %v1527, %v1555
        %1557 = vdwg.mxu0
        %v1558 = vxor.u32 %v1133, 2147483648
        %v1559 = vxor.u32 %v1191, 2147483648
        %v1560 = vxor.u32 %v1249, 2147483648
        %v1561 = vxor.u32 %v1307, 2147483648
        %v1562 = vxor.u32 %v1135, 2147483648
        %v1563 = vxor.u32 %v1193, 2147483648
        %v1564 = vxor.u32 %v1251, 2147483648
        %v1565 = vxor.u32 %v1309, 2147483648
        %v1566 = vxor.u32 %v1138, 2147483648
        %v1567 = vxor.u32 %v1196, 2147483648
        %v1568 = vxor.u32 %v1254, 2147483648
        %v1569 = vxor.u32 %v1312, 2147483648
        %v1570 = vxor.u32 %v1140, 2147483648
        %v1571 = vxor.u32 %v1198, 2147483648
        %v1572 = vxor.u32 %v1256, 2147483648
        %v1573 = vxor.u32 %v1314, 2147483648
        %v1574 = vxor.u32 %v1143, 2147483648
        %v1575 = vxor.u32 %v1201, 2147483648
        %v1576 = vxor.u32 %v1259, 2147483648
        %v1577 = vxor.u32 %v1317, 2147483648
        %v1578 = vxor.u32 %v1145, 2147483648
        %v1579 = vxor.u32 %v1203, 2147483648
        %v1580 = vxor.u32 %v1261, 2147483648
        %v1581 = vxor.u32 %v1319, 2147483648
        %v1582 = vxor.u32 %v1148, 2147483648
        %v1583 = vxor.u32 %v1206, 2147483648
        %v1584 = vxor.u32 %v1264, 2147483648
        %v1585 = vxor.u32 %v1322, 2147483648
        %v1586 = vxor.u32 %v1150, 2147483648
        %v1587 = vxor.u32 %v1208, 2147483648
        %v1588 = vxor.u32 %v1266, 2147483648
        %v1589 = vxor.u32 %v1324, 2147483648
        %v1590 = vmul.f32 %v1558, 1.442695
        %v1591 = vpow.pop %v1590
        %v1592 = vmul.f32 %v1559, 1.442695
        %v1593 = vpow.pop %v1592
        %v1594 = vmul.f32 %v1560, 1.442695
        %v1595 = vpow.pop %v1594
        %v1596 = vmul.f32 %v1561, 1.442695
        %v1597 = vpow.pop %v1596
        %v1598 = vmul.f32 %v1562, 1.442695
        %v1599 = vpow.pop %v1598
        %v1600 = vmul.f32 %v1563, 1.442695
        %v1601 = vpow.pop %v1600
        %v1602 = vmul.f32 %v1564, 1.442695
        %v1603 = vpow.pop %v1602
        %v1604 = vmul.f32 %v1565, 1.442695
        %v1605 = vpow.pop %v1604
        %v1606 = vmul.f32 %v1566, 1.442695
        %v1607 = vpow.pop %v1606
        %v1608 = vmul.f32 %v1567, 1.442695
        %v1609 = vpow.pop %v1608
        %v1610 = vmul.f32 %v1568, 1.442695
        %v1611 = vpow.pop %v1610
        %v1612 = vmul.f32 %v1569, 1.442695
        %v1613 = vpow.pop %v1612
        %v1614 = vmul.f32 %v1570, 1.442695
        %v1615 = vpow.pop %v1614
        %v1616 = vmul.f32 %v1571, 1.442695
        %v1617 = vpow.pop %v1616
        %v1618 = vmul.f32 %v1572, 1.442695
        %v1619 = vpow.pop %v1618
        %v1620 = vmul.f32 %v1573, 1.442695
        %v1621 = vpow.pop %v1620
        %v1622 = vmul.f32 %v1574, 1.442695
        %v1623 = vpow.pop %v1622
        %v1624 = vmul.f32 %v1575, 1.442695
        %v1625 = vpow.pop %v1624
        %v1626 = vmul.f32 %v1576, 1.442695
        %v1627 = vpow.pop %v1626
        %v1628 = vmul.f32 %v1577, 1.442695
        %v1629 = vpow.pop %v1628
        %v1630 = vmul.f32 %v1578, 1.442695
        %v1631 = vpow.pop %v1630
        %v1632 = vmul.f32 %v1579, 1.442695
        %v1633 = vpow.pop %v1632
        %v1634 = vmul.f32 %v1580, 1.442695
        %v1635 = vpow.pop %v1634
        %v1636 = vmul.f32 %v1581, 1.442695
        %v1637 = vpow.pop %v1636
        %v1638 = vmul.f32 %v1582, 1.442695
        %v1639 = vpow.pop %v1638
        %v1640 = vmul.f32 %v1583, 1.442695
        %v1641 = vpow.pop %v1640
        %v1642 = vmul.f32 %v1584, 1.442695
        %v1643 = vpow.pop %v1642
        %v1644 = vmul.f32 %v1585, 1.442695
        %v1645 = vpow.pop %v1644
        %v1646 = vmul.f32 %v1586, 1.442695
        %v1647 = vpow.pop %v1646
        %v1648 = vmul.f32 %v1587, 1.442695
        %v1649 = vpow.pop %v1648
        %v1650 = vmul.f32 %v1588, 1.442695
        %v1651 = vpow.pop %v1650
        %v1652 = vmul.f32 %v1589, 1.442695
        %v1653 = vpow.pop %v1652
        %v1654 = vadd.f32 %v1591, 1.0
        %v1655 = vadd.f32 %v1593, 1.0
        %v1656 = vadd.f32 %v1595, 1.0
        %v1657 = vadd.f32 %v1597, 1.0
        %v1658 = vadd.f32 %v1599, 1.0
        %v1659 = vadd.f32 %v1601, 1.0
        %v1660 = vadd.f32 %v1603, 1.0
        %v1661 = vadd.f32 %v1605, 1.0
        %v1662 = vadd.f32 %v1607, 1.0
        %v1663 = vadd.f32 %v1609, 1.0
        %v1664 = vadd.f32 %v1611, 1.0
        %v1665 = vadd.f32 %v1613, 1.0
        %v1666 = vadd.f32 %v1615, 1.0
        %v1667 = vadd.f32 %v1617, 1.0
        %v1668 = vadd.f32 %v1619, 1.0
        %v1669 = vadd.f32 %v1621, 1.0
        %v1670 = vadd.f32 %v1623, 1.0
        %v1671 = vadd.f32 %v1625, 1.0
        %v1672 = vadd.f32 %v1627, 1.0
        %v1673 = vadd.f32 %v1629, 1.0
        %v1674 = vadd.f32 %v1631, 1.0
        %v1675 = vadd.f32 %v1633, 1.0
        %v1676 = vadd.f32 %v1635, 1.0
        %v1677 = vadd.f32 %v1637, 1.0
        %v1678 = vadd.f32 %v1639, 1.0
        %v1679 = vadd.f32 %v1641, 1.0
        %v1680 = vadd.f32 %v1643, 1.0
        %v1681 = vadd.f32 %v1645, 1.0
        %v1682 = vadd.f32 %v1647, 1.0
        %v1683 = vadd.f32 %v1649, 1.0
        %v1684 = vadd.f32 %v1651, 1.0
        %v1685 = vadd.f32 %v1653, 1.0
        %v1686 = vrcp.pop %v1654
        %v1687 = vmul.f32 %v1654, %v1686
        %v1688 = vsub.f32 1.0, %v1687
        %v1689 = vmul.f32 %v1686, %v1688
        %v1690 = vadd.f32 %v1686, %v1689
        %vm1691 = vweird.f32 %v1654
        %vm1692 = vweird.f32 %v1686
        %vm1693 = vmor %vm1691, %vm1692
        %v1694 = vsel %vm1693, %v1686, %v1690
        %v1695 = vand.u32 2147483647, %v1654
        %vm1696 = vcmp.eq.f32.partialorder %v1695, 8.507059e+37
        %v1697 = vand.u32 %v1654, 2147483648
        %v1698 = vor.u32 1.1754944e-38, %v1697
        %v1699 = vsel %vm1696, %v1698, %v1694
        %v1700 = vmul.f32 1.0, %v1699
        %v1701 = vrcp.pop %v1655
        %v1702 = vmul.f32 %v1655, %v1701
        %v1703 = vsub.f32 1.0, %v1702
        %v1704 = vmul.f32 %v1701, %v1703
        %v1705 = vadd.f32 %v1701, %v1704
        %vm1706 = vweird.f32 %v1655
        %vm1707 = vweird.f32 %v1701
        %vm1708 = vmor %vm1706, %vm1707
        %v1709 = vsel %vm1708, %v1701, %v1705
        %v1710 = vand.u32 2147483647, %v1655
        %vm1711 = vcmp.eq.f32.partialorder %v1710, 8.507059e+37
        %v1712 = vand.u32 %v1655, 2147483648
        %v1713 = vor.u32 1.1754944e-38, %v1712
        %v1714 = vsel %vm1711, %v1713, %v1709
        %v1715 = vmul.f32 1.0, %v1714
        %v1716 = vrcp.pop %v1656
        %v1717 = vmul.f32 %v1656, %v1716
        %v1718 = vsub.f32 1.0, %v1717
        %v1719 = vmul.f32 %v1716, %v1718
        %v1720 = vadd.f32 %v1716, %v1719
        %vm1721 = vweird.f32 %v1656
        %vm1722 = vweird.f32 %v1716
        %vm1723 = vmor %vm1721, %vm1722
        %v1724 = vsel %vm1723, %v1716, %v1720
        %v1725 = vand.u32 2147483647, %v1656
        %vm1726 = vcmp.eq.f32.partialorder %v1725, 8.507059e+37
        %v1727 = vand.u32 %v1656, 2147483648
        %v1728 = vor.u32 1.1754944e-38, %v1727
        %v1729 = vsel %vm1726, %v1728, %v1724
        %v1730 = vmul.f32 1.0, %v1729
        %v1731 = vrcp.pop %v1657
        %v1732 = vmul.f32 %v1657, %v1731
        %v1733 = vsub.f32 1.0, %v1732
        %v1734 = vmul.f32 %v1731, %v1733
        %v1735 = vadd.f32 %v1731, %v1734
        %vm1736 = vweird.f32 %v1657
        %vm1737 = vweird.f32 %v1731
        %vm1738 = vmor %vm1736, %vm1737
        %v1739 = vsel %vm1738, %v1731, %v1735
        %v1740 = vand.u32 2147483647, %v1657
        %vm1741 = vcmp.eq.f32.partialorder %v1740, 8.507059e+37
        %v1742 = vand.u32 %v1657, 2147483648
        %v1743 = vor.u32 1.1754944e-38, %v1742
        %v1744 = vsel %vm1741, %v1743, %v1739
        %v1745 = vmul.f32 1.0, %v1744
        %v1746 = vrcp.pop %v1658
        %v1747 = vmul.f32 %v1658, %v1746
        %v1748 = vsub.f32 1.0, %v1747
        %v1749 = vmul.f32 %v1746, %v1748
        %v1750 = vadd.f32 %v1746, %v1749
        %vm1751 = vweird.f32 %v1658
        %vm1752 = vweird.f32 %v1746
        %vm1753 = vmor %vm1751, %vm1752
        %v1754 = vsel %vm1753, %v1746, %v1750
        %v1755 = vand.u32 2147483647, %v1658
        %vm1756 = vcmp.eq.f32.partialorder %v1755, 8.507059e+37
        %v1757 = vand.u32 %v1658, 2147483648
        %v1758 = vor.u32 1.1754944e-38, %v1757
        %v1759 = vsel %vm1756, %v1758, %v1754
        %v1760 = vmul.f32 1.0, %v1759
        %v1761 = vrcp.pop %v1659
        %v1762 = vmul.f32 %v1659, %v1761
        %v1763 = vsub.f32 1.0, %v1762
        %v1764 = vmul.f32 %v1761, %v1763
        %v1765 = vadd.f32 %v1761, %v1764
        %vm1766 = vweird.f32 %v1659
        %vm1767 = vweird.f32 %v1761
        %vm1768 = vmor %vm1766, %vm1767
        %v1769 = vsel %vm1768, %v1761, %v1765
        %v1770 = vand.u32 2147483647, %v1659
        %vm1771 = vcmp.eq.f32.partialorder %v1770, 8.507059e+37
        %v1772 = vand.u32 %v1659, 2147483648
        %v1773 = vor.u32 1.1754944e-38, %v1772
        %v1774 = vsel %vm1771, %v1773, %v1769
        %v1775 = vmul.f32 1.0, %v1774
        %v1776 = vrcp.pop %v1660
        %v1777 = vmul.f32 %v1660, %v1776
        %v1778 = vsub.f32 1.0, %v1777
        %v1779 = vmul.f32 %v1776, %v1778
        %v1780 = vadd.f32 %v1776, %v1779
        %vm1781 = vweird.f32 %v1660
        %vm1782 = vweird.f32 %v1776
        %vm1783 = vmor %vm1781, %vm1782
        %v1784 = vsel %vm1783, %v1776, %v1780
        %v1785 = vand.u32 2147483647, %v1660
        %vm1786 = vcmp.eq.f32.partialorder %v1785, 8.507059e+37
        %v1787 = vand.u32 %v1660, 2147483648
        %v1788 = vor.u32 1.1754944e-38, %v1787
        %v1789 = vsel %vm1786, %v1788, %v1784
        %v1790 = vmul.f32 1.0, %v1789
        %v1791 = vrcp.pop %v1661
        %v1792 = vmul.f32 %v1661, %v1791
        %v1793 = vsub.f32 1.0, %v1792
        %v1794 = vmul.f32 %v1791, %v1793
        %v1795 = vadd.f32 %v1791, %v1794
        %vm1796 = vweird.f32 %v1661
        %vm1797 = vweird.f32 %v1791
        %vm1798 = vmor %vm1796, %vm1797
        %v1799 = vsel %vm1798, %v1791, %v1795
        %v1800 = vand.u32 2147483647, %v1661
        %vm1801 = vcmp.eq.f32.partialorder %v1800, 8.507059e+37
        %v1802 = vand.u32 %v1661, 2147483648
        %v1803 = vor.u32 1.1754944e-38, %v1802
        %v1804 = vsel %vm1801, %v1803, %v1799
        %v1805 = vmul.f32 1.0, %v1804
        %v1806 = vrcp.pop %v1662
        %v1807 = vmul.f32 %v1662, %v1806
        %v1808 = vsub.f32 1.0, %v1807
        %v1809 = vmul.f32 %v1806, %v1808
        %v1810 = vadd.f32 %v1806, %v1809
        %vm1811 = vweird.f32 %v1662
        %vm1812 = vweird.f32 %v1806
        %vm1813 = vmor %vm1811, %vm1812
        %v1814 = vsel %vm1813, %v1806, %v1810
        %v1815 = vand.u32 2147483647, %v1662
        %vm1816 = vcmp.eq.f32.partialorder %v1815, 8.507059e+37
        %v1817 = vand.u32 %v1662, 2147483648
        %v1818 = vor.u32 1.1754944e-38, %v1817
        %v1819 = vsel %vm1816, %v1818, %v1814
        %v1820 = vmul.f32 1.0, %v1819
        %v1821 = vrcp.pop %v1663
        %v1822 = vmul.f32 %v1663, %v1821
        %v1823 = vsub.f32 1.0, %v1822
        %v1824 = vmul.f32 %v1821, %v1823
        %v1825 = vadd.f32 %v1821, %v1824
        %vm1826 = vweird.f32 %v1663
        %vm1827 = vweird.f32 %v1821
        %vm1828 = vmor %vm1826, %vm1827
        %v1829 = vsel %vm1828, %v1821, %v1825
        %v1830 = vand.u32 2147483647, %v1663
        %vm1831 = vcmp.eq.f32.partialorder %v1830, 8.507059e+37
        %v1832 = vand.u32 %v1663, 2147483648
        %v1833 = vor.u32 1.1754944e-38, %v1832
        %v1834 = vsel %vm1831, %v1833, %v1829
        %v1835 = vmul.f32 1.0, %v1834
        %v1836 = vrcp.pop %v1664
        %v1837 = vmul.f32 %v1664, %v1836
        %v1838 = vsub.f32 1.0, %v1837
        %v1839 = vmul.f32 %v1836, %v1838
        %v1840 = vadd.f32 %v1836, %v1839
        %vm1841 = vweird.f32 %v1664
        %vm1842 = vweird.f32 %v1836
        %vm1843 = vmor %vm1841, %vm1842
        %v1844 = vsel %vm1843, %v1836, %v1840
        %v1845 = vand.u32 2147483647, %v1664
        %vm1846 = vcmp.eq.f32.partialorder %v1845, 8.507059e+37
        %v1847 = vand.u32 %v1664, 2147483648
        %v1848 = vor.u32 1.1754944e-38, %v1847
        %v1849 = vsel %vm1846, %v1848, %v1844
        %v1850 = vmul.f32 1.0, %v1849
        %v1851 = vrcp.pop %v1665
        %v1852 = vmul.f32 %v1665, %v1851
        %v1853 = vsub.f32 1.0, %v1852
        %v1854 = vmul.f32 %v1851, %v1853
        %v1855 = vadd.f32 %v1851, %v1854
        %vm1856 = vweird.f32 %v1665
        %vm1857 = vweird.f32 %v1851
        %vm1858 = vmor %vm1856, %vm1857
        %v1859 = vsel %vm1858, %v1851, %v1855
        %v1860 = vand.u32 2147483647, %v1665
        %vm1861 = vcmp.eq.f32.partialorder %v1860, 8.507059e+37
        %v1862 = vand.u32 %v1665, 2147483648
        %v1863 = vor.u32 1.1754944e-38, %v1862
        %v1864 = vsel %vm1861, %v1863, %v1859
        %v1865 = vmul.f32 1.0, %v1864
        %v1866 = vrcp.pop %v1666
        %v1867 = vmul.f32 %v1666, %v1866
        %v1868 = vsub.f32 1.0, %v1867
        %v1869 = vmul.f32 %v1866, %v1868
        %v1870 = vadd.f32 %v1866, %v1869
        %vm1871 = vweird.f32 %v1666
        %vm1872 = vweird.f32 %v1866
        %vm1873 = vmor %vm1871, %vm1872
        %v1874 = vsel %vm1873, %v1866, %v1870
        %v1875 = vand.u32 2147483647, %v1666
        %vm1876 = vcmp.eq.f32.partialorder %v1875, 8.507059e+37
        %v1877 = vand.u32 %v1666, 2147483648
        %v1878 = vor.u32 1.1754944e-38, %v1877
        %v1879 = vsel %vm1876, %v1878, %v1874
        %v1880 = vmul.f32 1.0, %v1879
        %v1881 = vrcp.pop %v1667
        %v1882 = vmul.f32 %v1667, %v1881
        %v1883 = vsub.f32 1.0, %v1882
        %v1884 = vmul.f32 %v1881, %v1883
        %v1885 = vadd.f32 %v1881, %v1884
        %vm1886 = vweird.f32 %v1667
        %vm1887 = vweird.f32 %v1881
        %vm1888 = vmor %vm1886, %vm1887
        %v1889 = vsel %vm1888, %v1881, %v1885
        %v1890 = vand.u32 2147483647, %v1667
        %vm1891 = vcmp.eq.f32.partialorder %v1890, 8.507059e+37
        %v1892 = vand.u32 %v1667, 2147483648
        %v1893 = vor.u32 1.1754944e-38, %v1892
        %v1894 = vsel %vm1891, %v1893, %v1889
        %v1895 = vmul.f32 1.0, %v1894
        %v1896 = vrcp.pop %v1668
        %v1897 = vmul.f32 %v1668, %v1896
        %v1898 = vsub.f32 1.0, %v1897
        %v1899 = vmul.f32 %v1896, %v1898
        %v1900 = vadd.f32 %v1896, %v1899
        %vm1901 = vweird.f32 %v1668
        %vm1902 = vweird.f32 %v1896
        %vm1903 = vmor %vm1901, %vm1902
        %v1904 = vsel %vm1903, %v1896, %v1900
        %v1905 = vand.u32 2147483647, %v1668
        %vm1906 = vcmp.eq.f32.partialorder %v1905, 8.507059e+37
        %v1907 = vand.u32 %v1668, 2147483648
        %v1908 = vor.u32 1.1754944e-38, %v1907
        %v1909 = vsel %vm1906, %v1908, %v1904
        %v1910 = vmul.f32 1.0, %v1909
        %v1911 = vrcp.pop %v1669
        %v1912 = vmul.f32 %v1669, %v1911
        %v1913 = vsub.f32 1.0, %v1912
        %v1914 = vmul.f32 %v1911, %v1913
        %v1915 = vadd.f32 %v1911, %v1914
        %vm1916 = vweird.f32 %v1669
        %vm1917 = vweird.f32 %v1911
        %vm1918 = vmor %vm1916, %vm1917
        %v1919 = vsel %vm1918, %v1911, %v1915
        %v1920 = vand.u32 2147483647, %v1669
        %vm1921 = vcmp.eq.f32.partialorder %v1920, 8.507059e+37
        %v1922 = vand.u32 %v1669, 2147483648
        %v1923 = vor.u32 1.1754944e-38, %v1922
        %v1924 = vsel %vm1921, %v1923, %v1919
        %v1925 = vmul.f32 1.0, %v1924
        %v1926 = vrcp.pop %v1670
        %v1927 = vmul.f32 %v1670, %v1926
        %v1928 = vsub.f32 1.0, %v1927
        %v1929 = vmul.f32 %v1926, %v1928
        %v1930 = vadd.f32 %v1926, %v1929
        %vm1931 = vweird.f32 %v1670
        %vm1932 = vweird.f32 %v1926
        %vm1933 = vmor %vm1931, %vm1932
        %v1934 = vsel %vm1933, %v1926, %v1930
        %v1935 = vand.u32 2147483647, %v1670
        %vm1936 = vcmp.eq.f32.partialorder %v1935, 8.507059e+37
        %v1937 = vand.u32 %v1670, 2147483648
        %v1938 = vor.u32 1.1754944e-38, %v1937
        %v1939 = vsel %vm1936, %v1938, %v1934
        %v1940 = vmul.f32 1.0, %v1939
        %v1941 = vrcp.pop %v1671
        %v1942 = vmul.f32 %v1671, %v1941
        %v1943 = vsub.f32 1.0, %v1942
        %v1944 = vmul.f32 %v1941, %v1943
        %v1945 = vadd.f32 %v1941, %v1944
        %vm1946 = vweird.f32 %v1671
        %vm1947 = vweird.f32 %v1941
        %vm1948 = vmor %vm1946, %vm1947
        %v1949 = vsel %vm1948, %v1941, %v1945
        %v1950 = vand.u32 2147483647, %v1671
        %vm1951 = vcmp.eq.f32.partialorder %v1950, 8.507059e+37
        %v1952 = vand.u32 %v1671, 2147483648
        %v1953 = vor.u32 1.1754944e-38, %v1952
        %v1954 = vsel %vm1951, %v1953, %v1949
        %v1955 = vmul.f32 1.0, %v1954
        %v1956 = vrcp.pop %v1672
        %v1957 = vmul.f32 %v1672, %v1956
        %v1958 = vsub.f32 1.0, %v1957
        %v1959 = vmul.f32 %v1956, %v1958
        %v1960 = vadd.f32 %v1956, %v1959
        %vm1961 = vweird.f32 %v1672
        %vm1962 = vweird.f32 %v1956
        %vm1963 = vmor %vm1961, %vm1962
        %v1964 = vsel %vm1963, %v1956, %v1960
        %v1965 = vand.u32 2147483647, %v1672
        %vm1966 = vcmp.eq.f32.partialorder %v1965, 8.507059e+37
        %v1967 = vand.u32 %v1672, 2147483648
        %v1968 = vor.u32 1.1754944e-38, %v1967
        %v1969 = vsel %vm1966, %v1968, %v1964
        %v1970 = vmul.f32 1.0, %v1969
        %v1971 = vrcp.pop %v1673
        %v1972 = vmul.f32 %v1673, %v1971
        %v1973 = vsub.f32 1.0, %v1972
        %v1974 = vmul.f32 %v1971, %v1973
        %v1975 = vadd.f32 %v1971, %v1974
        %vm1976 = vweird.f32 %v1673
        %vm1977 = vweird.f32 %v1971
        %vm1978 = vmor %vm1976, %vm1977
        %v1979 = vsel %vm1978, %v1971, %v1975
        %v1980 = vand.u32 2147483647, %v1673
        %vm1981 = vcmp.eq.f32.partialorder %v1980, 8.507059e+37
        %v1982 = vand.u32 %v1673, 2147483648
        %v1983 = vor.u32 1.1754944e-38, %v1982
        %v1984 = vsel %vm1981, %v1983, %v1979
        %v1985 = vmul.f32 1.0, %v1984
        %v1986 = vrcp.pop %v1674
        %v1987 = vmul.f32 %v1674, %v1986
        %v1988 = vsub.f32 1.0, %v1987
        %v1989 = vmul.f32 %v1986, %v1988
        %v1990 = vadd.f32 %v1986, %v1989
        %vm1991 = vweird.f32 %v1674
        %vm1992 = vweird.f32 %v1986
        %vm1993 = vmor %vm1991, %vm1992
        %v1994 = vsel %vm1993, %v1986, %v1990
        %v1995 = vand.u32 2147483647, %v1674
        %vm1996 = vcmp.eq.f32.partialorder %v1995, 8.507059e+37
        %v1997 = vand.u32 %v1674, 2147483648
        %v1998 = vor.u32 1.1754944e-38, %v1997
        %v1999 = vsel %vm1996, %v1998, %v1994
        %v2000 = vmul.f32 1.0, %v1999
        %v2001 = vrcp.pop %v1675
        %v2002 = vmul.f32 %v1675, %v2001
        %v2003 = vsub.f32 1.0, %v2002
        %v2004 = vmul.f32 %v2001, %v2003
        %v2005 = vadd.f32 %v2001, %v2004
        %vm2006 = vweird.f32 %v1675
        %vm2007 = vweird.f32 %v2001
        %vm2008 = vmor %vm2006, %vm2007
        %v2009 = vsel %vm2008, %v2001, %v2005
        %v2010 = vand.u32 2147483647, %v1675
        %vm2011 = vcmp.eq.f32.partialorder %v2010, 8.507059e+37
        %v2012 = vand.u32 %v1675, 2147483648
        %v2013 = vor.u32 1.1754944e-38, %v2012
        %v2014 = vsel %vm2011, %v2013, %v2009
        %v2015 = vmul.f32 1.0, %v2014
        %v2016 = vrcp.pop %v1676
        %v2017 = vmul.f32 %v1676, %v2016
        %v2018 = vsub.f32 1.0, %v2017
        %v2019 = vmul.f32 %v2016, %v2018
        %v2020 = vadd.f32 %v2016, %v2019
        %vm2021 = vweird.f32 %v1676
        %vm2022 = vweird.f32 %v2016
        %vm2023 = vmor %vm2021, %vm2022
        %v2024 = vsel %vm2023, %v2016, %v2020
        %v2025 = vand.u32 2147483647, %v1676
        %vm2026 = vcmp.eq.f32.partialorder %v2025, 8.507059e+37
        %v2027 = vand.u32 %v1676, 2147483648
        %v2028 = vor.u32 1.1754944e-38, %v2027
        %v2029 = vsel %vm2026, %v2028, %v2024
        %v2030 = vmul.f32 1.0, %v2029
        %v2031 = vrcp.pop %v1677
        %v2032 = vmul.f32 %v1677, %v2031
        %v2033 = vsub.f32 1.0, %v2032
        %v2034 = vmul.f32 %v2031, %v2033
        %v2035 = vadd.f32 %v2031, %v2034
        %vm2036 = vweird.f32 %v1677
        %vm2037 = vweird.f32 %v2031
        %vm2038 = vmor %vm2036, %vm2037
        %v2039 = vsel %vm2038, %v2031, %v2035
        %v2040 = vand.u32 2147483647, %v1677
        %vm2041 = vcmp.eq.f32.partialorder %v2040, 8.507059e+37
        %v2042 = vand.u32 %v1677, 2147483648
        %v2043 = vor.u32 1.1754944e-38, %v2042
        %v2044 = vsel %vm2041, %v2043, %v2039
        %v2045 = vmul.f32 1.0, %v2044
        %v2046 = vrcp.pop %v1678
        %v2047 = vmul.f32 %v1678, %v2046
        %v2048 = vsub.f32 1.0, %v2047
        %v2049 = vmul.f32 %v2046, %v2048
        %v2050 = vadd.f32 %v2046, %v2049
        %vm2051 = vweird.f32 %v1678
        %vm2052 = vweird.f32 %v2046
        %vm2053 = vmor %vm2051, %vm2052
        %v2054 = vsel %vm2053, %v2046, %v2050
        %v2055 = vand.u32 2147483647, %v1678
        %vm2056 = vcmp.eq.f32.partialorder %v2055, 8.507059e+37
        %v2057 = vand.u32 %v1678, 2147483648
        %v2058 = vor.u32 1.1754944e-38, %v2057
        %v2059 = vsel %vm2056, %v2058, %v2054
        %v2060 = vmul.f32 1.0, %v2059
        %v2061 = vrcp.pop %v1679
        %v2062 = vmul.f32 %v1679, %v2061
        %v2063 = vsub.f32 1.0, %v2062
        %v2064 = vmul.f32 %v2061, %v2063
        %v2065 = vadd.f32 %v2061, %v2064
        %vm2066 = vweird.f32 %v1679
        %vm2067 = vweird.f32 %v2061
        %vm2068 = vmor %vm2066, %vm2067
        %v2069 = vsel %vm2068, %v2061, %v2065
        %v2070 = vand.u32 2147483647, %v1679
        %vm2071 = vcmp.eq.f32.partialorder %v2070, 8.507059e+37
        %v2072 = vand.u32 %v1679, 2147483648
        %v2073 = vor.u32 1.1754944e-38, %v2072
        %v2074 = vsel %vm2071, %v2073, %v2069
        %v2075 = vmul.f32 1.0, %v2074
        %v2076 = vrcp.pop %v1680
        %v2077 = vmul.f32 %v1680, %v2076
        %v2078 = vsub.f32 1.0, %v2077
        %v2079 = vmul.f32 %v2076, %v2078
        %v2080 = vadd.f32 %v2076, %v2079
        %vm2081 = vweird.f32 %v1680
        %vm2082 = vweird.f32 %v2076
        %vm2083 = vmor %vm2081, %vm2082
        %v2084 = vsel %vm2083, %v2076, %v2080
        %v2085 = vand.u32 2147483647, %v1680
        %vm2086 = vcmp.eq.f32.partialorder %v2085, 8.507059e+37
        %v2087 = vand.u32 %v1680, 2147483648
        %v2088 = vor.u32 1.1754944e-38, %v2087
        %v2089 = vsel %vm2086, %v2088, %v2084
        %v2090 = vmul.f32 1.0, %v2089
        %v2091 = vrcp.pop %v1681
        %v2092 = vmul.f32 %v1681, %v2091
        %v2093 = vsub.f32 1.0, %v2092
        %v2094 = vmul.f32 %v2091, %v2093
        %v2095 = vadd.f32 %v2091, %v2094
        %vm2096 = vweird.f32 %v1681
        %vm2097 = vweird.f32 %v2091
        %vm2098 = vmor %vm2096, %vm2097
        %v2099 = vsel %vm2098, %v2091, %v2095
        %v2100 = vand.u32 2147483647, %v1681
        %vm2101 = vcmp.eq.f32.partialorder %v2100, 8.507059e+37
        %v2102 = vand.u32 %v1681, 2147483648
        %v2103 = vor.u32 1.1754944e-38, %v2102
        %v2104 = vsel %vm2101, %v2103, %v2099
        %v2105 = vmul.f32 1.0, %v2104
        %v2106 = vrcp.pop %v1682
        %v2107 = vmul.f32 %v1682, %v2106
        %v2108 = vsub.f32 1.0, %v2107
        %v2109 = vmul.f32 %v2106, %v2108
        %v2110 = vadd.f32 %v2106, %v2109
        %vm2111 = vweird.f32 %v1682
        %vm2112 = vweird.f32 %v2106
        %vm2113 = vmor %vm2111, %vm2112
        %v2114 = vsel %vm2113, %v2106, %v2110
        %v2115 = vand.u32 2147483647, %v1682
        %vm2116 = vcmp.eq.f32.partialorder %v2115, 8.507059e+37
        %v2117 = vand.u32 %v1682, 2147483648
        %v2118 = vor.u32 1.1754944e-38, %v2117
        %v2119 = vsel %vm2116, %v2118, %v2114
        %v2120 = vmul.f32 1.0, %v2119
        %v2121 = vrcp.pop %v1683
        %v2122 = vmul.f32 %v1683, %v2121
        %v2123 = vsub.f32 1.0, %v2122
        %v2124 = vmul.f32 %v2121, %v2123
        %v2125 = vadd.f32 %v2121, %v2124
        %vm2126 = vweird.f32 %v1683
        %vm2127 = vweird.f32 %v2121
        %vm2128 = vmor %vm2126, %vm2127
        %v2129 = vsel %vm2128, %v2121, %v2125
        %v2130 = vand.u32 2147483647, %v1683
        %vm2131 = vcmp.eq.f32.partialorder %v2130, 8.507059e+37
        %v2132 = vand.u32 %v1683, 2147483648
        %v2133 = vor.u32 1.1754944e-38, %v2132
        %v2134 = vsel %vm2131, %v2133, %v2129
        %v2135 = vmul.f32 1.0, %v2134
        %v2136 = vrcp.pop %v1684
        %v2137 = vmul.f32 %v1684, %v2136
        %v2138 = vsub.f32 1.0, %v2137
        %v2139 = vmul.f32 %v2136, %v2138
        %v2140 = vadd.f32 %v2136, %v2139
        %vm2141 = vweird.f32 %v1684
        %vm2142 = vweird.f32 %v2136
        %vm2143 = vmor %vm2141, %vm2142
        %v2144 = vsel %vm2143, %v2136, %v2140
        %v2145 = vand.u32 2147483647, %v1684
        %vm2146 = vcmp.eq.f32.partialorder %v2145, 8.507059e+37
        %v2147 = vand.u32 %v1684, 2147483648
        %v2148 = vor.u32 1.1754944e-38, %v2147
        %v2149 = vsel %vm2146, %v2148, %v2144
        %v2150 = vmul.f32 1.0, %v2149
        %v2151 = vrcp.pop %v1685
        %v2152 = vmul.f32 %v1685, %v2151
        %v2153 = vsub.f32 1.0, %v2152
        %v2154 = vmul.f32 %v2151, %v2153
        %v2155 = vadd.f32 %v2151, %v2154
        %vm2156 = vweird.f32 %v1685
        %vm2157 = vweird.f32 %v2151
        %vm2158 = vmor %vm2156, %vm2157
        %v2159 = vsel %vm2158, %v2151, %v2155
        %v2160 = vand.u32 2147483647, %v1685
        %vm2161 = vcmp.eq.f32.partialorder %v2160, 8.507059e+37
        %v2162 = vand.u32 %v1685, 2147483648
        %v2163 = vor.u32 1.1754944e-38, %v2162
        %v2164 = vsel %vm2161, %v2163, %v2159
        %v2165 = vmul.f32 1.0, %v2164
        %v2166 = vmul.f32 %v1133, %v1700
        %v2167 = vmul.f32 %v1191, %v1715
        %v2168 = vmul.f32 %v1249, %v1730
        %v2169 = vmul.f32 %v1307, %v1745
        %v2170 = vmul.f32 %v1135, %v1760
        %v2171 = vmul.f32 %v1193, %v1775
        %v2172 = vmul.f32 %v1251, %v1790
        %v2173 = vmul.f32 %v1309, %v1805
        %v2174 = vmul.f32 %v1138, %v1820
        %v2175 = vmul.f32 %v1196, %v1835
        %v2176 = vmul.f32 %v1254, %v1850
        %v2177 = vmul.f32 %v1312, %v1865
        %v2178 = vmul.f32 %v1140, %v1880
        %v2179 = vmul.f32 %v1198, %v1895
        %v2180 = vmul.f32 %v1256, %v1910
        %v2181 = vmul.f32 %v1314, %v1925
        %v2182 = vmul.f32 %v1143, %v1940
        %v2183 = vmul.f32 %v1201, %v1955
        %v2184 = vmul.f32 %v1259, %v1970
        %v2185 = vmul.f32 %v1317, %v1985
        %v2186 = vmul.f32 %v1145, %v2000
        %v2187 = vmul.f32 %v1203, %v2015
        %v2188 = vmul.f32 %v1261, %v2030
        %v2189 = vmul.f32 %v1319, %v2045
        %v2190 = vmul.f32 %v1148, %v2060
        %v2191 = vmul.f32 %v1206, %v2075
        %v2192 = vmul.f32 %v1264, %v2090
        %v2193 = vmul.f32 %v1322, %v2105
        %v2194 = vmul.f32 %v1150, %v2120
        %v2195 = vmul.f32 %v1208, %v2135
        %v2196 = vmul.f32 %v1266, %v2150
        %v2197 = vmul.f32 %v1324, %v2165
        %v2198 = vmul.f32 %v2166, %v1365
        %v2199 = vmul.f32 %v2167, %v1423
        %v2200 = vmul.f32 %v2168, %v1481
        %v2201 = vmul.f32 %v2169, %v1539
        %v2202 = vmul.f32 %v2170, %v1367
        %v2203 = vmul.f32 %v2171, %v1425
        %v2204 = vmul.f32 %v2172, %v1483
        %v2205 = vmul.f32 %v2173, %v1541
        %v2206 = vmul.f32 %v2174, %v1370
        %v2207 = vmul.f32 %v2175, %v1428
        %v2208 = vmul.f32 %v2176, %v1486
        %v2209 = vmul.f32 %v2177, %v1544
        %v2210 = vmul.f32 %v2178, %v1372
        %v2211 = vmul.f32 %v2179, %v1430
        %v2212 = vmul.f32 %v2180, %v1488
        %v2213 = vmul.f32 %v2181, %v1546
        %v2214 = vmul.f32 %v2182, %v1375
        %v2215 = vmul.f32 %v2183, %v1433
        %v2216 = vmul.f32 %v2184, %v1491
        %v2217 = vmul.f32 %v2185, %v1549
        %v2218 = vmul.f32 %v2186, %v1377
        %v2219 = vmul.f32 %v2187, %v1435
        %v2220 = vmul.f32 %v2188, %v1493
        %v2221 = vmul.f32 %v2189, %v1551
        %v2222 = vmul.f32 %v2190, %v1380
        %v2223 = vmul.f32 %v2191, %v1438
        %v2224 = vmul.f32 %v2192, %v1496
        %v2225 = vmul.f32 %v2193, %v1554
        %v2226 = vmul.f32 %v2194, %v1382
        %v2227 = vmul.f32 %v2195, %v1440
        %v2228 = vmul.f32 %v2196, %v1498
        %v2229 = vmul.f32 %v2197, %v1556
        %v2230 = vld [vmem:[#allocation2] sm:$0xff]
        %v2231 = vld [vmem:[#allocation2 + $0x8] sm:$0xff]
        %v2232 = vld [vmem:[#allocation2 + $0x10] sm:$0xff]
        %v2233 = vld [vmem:[#allocation2 + $0x18] sm:$0xff]
        %v2234 = vld [vmem:[#allocation2 + $0x20] sm:$0xff]
        %v2235 = vld [vmem:[#allocation2 + $0x28] sm:$0xff]
        %v2236 = vld [vmem:[#allocation2 + $0x30] sm:$0xff]
        %v2237 = vld [vmem:[#allocation2 + $0x38] sm:$0xff]
        %v2238 = vld [vmem:[#allocation2 + $0x40] sm:$0xff]
        %v2239 = vld [vmem:[#allocation2 + $0x48] sm:$0xff]
        %v2240 = vld [vmem:[#allocation2 + $0x50] sm:$0xff]
        %v2241 = vld [vmem:[#allocation2 + $0x58] sm:$0xff]
        %v2242 = vld [vmem:[#allocation2 + $0x60] sm:$0xff]
        %v2243 = vld [vmem:[#allocation2 + $0x68] sm:$0xff]
        %v2244 = vld [vmem:[#allocation2 + $0x70] sm:$0xff]
        %v2245 = vld [vmem:[#allocation2 + $0x78] sm:$0xff]
        %v2246 = vpack.c.bf16 %v2202, %v2198
        %v2247 = vpack.c.bf16 %v2203, %v2199
        %v2248 = vpack.c.bf16 %v2204, %v2200
        %v2249 = vpack.c.bf16 %v2205, %v2201
        %v2250 = vpack.c.bf16 %v2210, %v2206
        %v2251 = vpack.c.bf16 %v2211, %v2207
        %v2252 = vpack.c.bf16 %v2212, %v2208
        %v2253 = vpack.c.bf16 %v2213, %v2209
        %v2254 = vpack.c.bf16 %v2218, %v2214
        %v2255 = vpack.c.bf16 %v2219, %v2215
        %v2256 = vpack.c.bf16 %v2220, %v2216
        %v2257 = vpack.c.bf16 %v2221, %v2217
        %v2258 = vpack.c.bf16 %v2226, %v2222
        %v2259 = vpack.c.bf16 %v2227, %v2223
        %v2260 = vpack.c.bf16 %v2228, %v2224
        %v2261 = vpack.c.bf16 %v2229, %v2225
        %v2262 = vld [vmem:[#allocation8] sm:$0xff]
        %v2263 = vld [vmem:[#allocation8 + $0x8] sm:$0xff]
        %v2264 = vld [vmem:[#allocation8 + $0x10] sm:$0xff]
        %v2265 = vld [vmem:[#allocation8 + $0x18] sm:$0xff]
        %v2266 = vld [vmem:[#allocation8 + $0x20] sm:$0xff]
        %v2267 = vld [vmem:[#allocation8 + $0x28] sm:$0xff]
        %v2268 = vld [vmem:[#allocation8 + $0x30] sm:$0xff]
        %v2269 = vld [vmem:[#allocation8 + $0x38] sm:$0xff]
        %v2270 = vld [vmem:[#allocation8 + $0x40] sm:$0xff]
        %v2271 = vld [vmem:[#allocation8 + $0x48] sm:$0xff]
        %v2272 = vld [vmem:[#allocation8 + $0x50] sm:$0xff]
        %v2273 = vld [vmem:[#allocation8 + $0x58] sm:$0xff]
        %v2274 = vld [vmem:[#allocation8 + $0x60] sm:$0xff]
        %v2275 = vld [vmem:[#allocation8 + $0x68] sm:$0xff]
        %v2276 = vld [vmem:[#allocation8 + $0x70] sm:$0xff]
        %v2277 = vld [vmem:[#allocation8 + $0x78] sm:$0xff]
        %v2278 = vld [vmem:[#allocation8 + $0x80] sm:$0xff]
        %v2279 = vld [vmem:[#allocation8 + $0x88] sm:$0xff]
        %v2280 = vld [vmem:[#allocation8 + $0x90] sm:$0xff]
        %v2281 = vld [vmem:[#allocation8 + $0x98] sm:$0xff]
        %v2282 = vld [vmem:[#allocation8 + $0xa0] sm:$0xff]
        %v2283 = vld [vmem:[#allocation8 + $0xa8] sm:$0xff]
        %v2284 = vld [vmem:[#allocation8 + $0xb0] sm:$0xff]
        %v2285 = vld [vmem:[#allocation8 + $0xb8] sm:$0xff]
        %v2286 = vld [vmem:[#allocation8 + $0xc0] sm:$0xff]
        %v2287 = vld [vmem:[#allocation8 + $0xc8] sm:$0xff]
        %v2288 = vld [vmem:[#allocation8 + $0xd0] sm:$0xff]
        %v2289 = vld [vmem:[#allocation8 + $0xd8] sm:$0xff]
        %v2290 = vld [vmem:[#allocation8 + $0xe0] sm:$0xff]
        %v2291 = vld [vmem:[#allocation8 + $0xe8] sm:$0xff]
        %v2292 = vld [vmem:[#allocation8 + $0xf0] sm:$0xff]
        %v2293 = vld [vmem:[#allocation8 + $0xf8] sm:$0xff]
        %v2294 = vld [vmem:[#allocation8 + $0x100] sm:$0xff]
        %v2295 = vld [vmem:[#allocation8 + $0x108] sm:$0xff]
        %v2296 = vld [vmem:[#allocation8 + $0x110] sm:$0xff]
        %v2297 = vld [vmem:[#allocation8 + $0x118] sm:$0xff]
        %v2298 = vld [vmem:[#allocation8 + $0x120] sm:$0xff]
        %v2299 = vld [vmem:[#allocation8 + $0x128] sm:$0xff]
        %v2300 = vld [vmem:[#allocation8 + $0x130] sm:$0xff]
        %v2301 = vld [vmem:[#allocation8 + $0x138] sm:$0xff]
        %v2302 = vld [vmem:[#allocation8 + $0x140] sm:$0xff]
        %v2303 = vld [vmem:[#allocation8 + $0x148] sm:$0xff]
        %v2304 = vld [vmem:[#allocation8 + $0x150] sm:$0xff]
        %v2305 = vld [vmem:[#allocation8 + $0x158] sm:$0xff]
        %v2306 = vld [vmem:[#allocation8 + $0x160] sm:$0xff]
        %v2307 = vld [vmem:[#allocation8 + $0x168] sm:$0xff]
        %v2308 = vld [vmem:[#allocation8 + $0x170] sm:$0xff]
        %v2309 = vld [vmem:[#allocation8 + $0x178] sm:$0xff]
        %v2310 = vld [vmem:[#allocation8 + $0x180] sm:$0xff]
        %v2311 = vld [vmem:[#allocation8 + $0x188] sm:$0xff]
        %v2312 = vld [vmem:[#allocation8 + $0x190] sm:$0xff]
        %v2313 = vld [vmem:[#allocation8 + $0x198] sm:$0xff]
        %v2314 = vld [vmem:[#allocation8 + $0x1a0] sm:$0xff]
        %v2315 = vld [vmem:[#allocation8 + $0x1a8] sm:$0xff]
        %v2316 = vld [vmem:[#allocation8 + $0x1b0] sm:$0xff]
        %v2317 = vld [vmem:[#allocation8 + $0x1b8] sm:$0xff]
        %v2318 = vld [vmem:[#allocation8 + $0x1c0] sm:$0xff]
        %v2319 = vld [vmem:[#allocation8 + $0x1c8] sm:$0xff]
        %v2320 = vld [vmem:[#allocation8 + $0x1d0] sm:$0xff]
        %v2321 = vld [vmem:[#allocation8 + $0x1d8] sm:$0xff]
        %v2322 = vld [vmem:[#allocation8 + $0x1e0] sm:$0xff]
        %v2323 = vld [vmem:[#allocation8 + $0x1e8] sm:$0xff]
        %v2324 = vld [vmem:[#allocation8 + $0x1f0] sm:$0xff]
        %v2325 = vld [vmem:[#allocation8 + $0x1f8] sm:$0xff]
        %v2390 = vunpack.c.l.b16 %v2262
        %v2391 = vunpack.c.h.b16 %v2262
        %v2392 = vunpack.c.l.b16 %v2263
        %v2393 = vunpack.c.h.b16 %v2263
        %v2394 = vunpack.c.l.b16 %v2264
        %v2395 = vunpack.c.h.b16 %v2264
        %v2396 = vunpack.c.l.b16 %v2265
        %v2397 = vunpack.c.h.b16 %v2265
        %v2398 = vunpack.c.l.b16 %v2266
        %v2399 = vunpack.c.h.b16 %v2266
        %v2400 = vunpack.c.l.b16 %v2267
        %v2401 = vunpack.c.h.b16 %v2267
        %v2402 = vunpack.c.l.b16 %v2268
        %v2403 = vunpack.c.h.b16 %v2268
        %v2404 = vunpack.c.l.b16 %v2269
        %v2405 = vunpack.c.h.b16 %v2269
        %v2406 = vunpack.c.l.b16 %v2270
        %v2407 = vunpack.c.h.b16 %v2270
        %v2408 = vunpack.c.l.b16 %v2271
        %v2409 = vunpack.c.h.b16 %v2271
        %v2410 = vunpack.c.l.b16 %v2272
        %v2411 = vunpack.c.h.b16 %v2272
        %v2412 = vunpack.c.l.b16 %v2273
        %v2413 = vunpack.c.h.b16 %v2273
        %v2414 = vunpack.c.l.b16 %v2274
        %v2415 = vunpack.c.h.b16 %v2274
        %v2416 = vunpack.c.l.b16 %v2275
        %v2417 = vunpack.c.h.b16 %v2275
        %v2418 = vunpack.c.l.b16 %v2276
        %v2419 = vunpack.c.h.b16 %v2276
        %v2420 = vunpack.c.l.b16 %v2277
        %v2421 = vunpack.c.h.b16 %v2277
        %v2422 = vunpack.c.l.b16 %v2278
        %v2423 = vunpack.c.h.b16 %v2278
        %v2424 = vunpack.c.l.b16 %v2279
        %v2425 = vunpack.c.h.b16 %v2279
        %v2426 = vunpack.c.l.b16 %v2280
        %v2427 = vunpack.c.h.b16 %v2280
        %v2428 = vunpack.c.l.b16 %v2281
        %v2429 = vunpack.c.h.b16 %v2281
        %v2430 = vunpack.c.l.b16 %v2282
        %v2431 = vunpack.c.h.b16 %v2282
        %v2432 = vunpack.c.l.b16 %v2283
        %v2433 = vunpack.c.h.b16 %v2283
        %v2434 = vunpack.c.l.b16 %v2284
        %v2435 = vunpack.c.h.b16 %v2284
        %v2436 = vunpack.c.l.b16 %v2285
        %v2437 = vunpack.c.h.b16 %v2285
        %v2438 = vunpack.c.l.b16 %v2286
        %v2439 = vunpack.c.h.b16 %v2286
        %v2440 = vunpack.c.l.b16 %v2287
        %v2441 = vunpack.c.h.b16 %v2287
        %v2442 = vunpack.c.l.b16 %v2288
        %v2443 = vunpack.c.h.b16 %v2288
        %v2444 = vunpack.c.l.b16 %v2289
        %v2445 = vunpack.c.h.b16 %v2289
        %v2446 = vunpack.c.l.b16 %v2290
        %v2447 = vunpack.c.h.b16 %v2290
        %v2448 = vunpack.c.l.b16 %v2291
        %v2449 = vunpack.c.h.b16 %v2291
        %v2450 = vunpack.c.l.b16 %v2292
        %v2451 = vunpack.c.h.b16 %v2292
        %v2452 = vunpack.c.l.b16 %v2293
        %v2453 = vunpack.c.h.b16 %v2293
        %v2454 = vunpack.c.l.b16 %v2294
        %v2455 = vunpack.c.h.b16 %v2294
        %v2456 = vunpack.c.l.b16 %v2295
        %v2457 = vunpack.c.h.b16 %v2295
        %v2458 = vunpack.c.l.b16 %v2296
        %v2459 = vunpack.c.h.b16 %v2296
        %v2460 = vunpack.c.l.b16 %v2297
        %v2461 = vunpack.c.h.b16 %v2297
        %v2462 = vunpack.c.l.b16 %v2298
        %v2463 = vunpack.c.h.b16 %v2298
        %v2464 = vunpack.c.l.b16 %v2299
        %v2465 = vunpack.c.h.b16 %v2299
        %v2466 = vunpack.c.l.b16 %v2300
        %v2467 = vunpack.c.h.b16 %v2300
        %v2468 = vunpack.c.l.b16 %v2301
        %v2469 = vunpack.c.h.b16 %v2301
        %v2470 = vunpack.c.l.b16 %v2302
        %v2471 = vunpack.c.h.b16 %v2302
        %v2472 = vunpack.c.l.b16 %v2303
        %v2473 = vunpack.c.h.b16 %v2303
        %v2474 = vunpack.c.l.b16 %v2304
        %v2475 = vunpack.c.h.b16 %v2304
        %v2476 = vunpack.c.l.b16 %v2305
        %v2477 = vunpack.c.h.b16 %v2305
        %v2478 = vunpack.c.l.b16 %v2306
        %v2479 = vunpack.c.h.b16 %v2306
        %v2480 = vunpack.c.l.b16 %v2307
        %v2481 = vunpack.c.h.b16 %v2307
        %v2482 = vunpack.c.l.b16 %v2308
        %v2483 = vunpack.c.h.b16 %v2308
        %v2484 = vunpack.c.l.b16 %v2309
        %v2485 = vunpack.c.h.b16 %v2309
        %v2486 = vunpack.c.l.b16 %v2310
        %v2487 = vunpack.c.h.b16 %v2310
        %v2488 = vunpack.c.l.b16 %v2311
        %v2489 = vunpack.c.h.b16 %v2311
        %v2490 = vunpack.c.l.b16 %v2312
        %v2491 = vunpack.c.h.b16 %v2312
        %v2492 = vunpack.c.l.b16 %v2313
        %v2493 = vunpack.c.h.b16 %v2313
        %v2494 = vunpack.c.l.b16 %v2314
        %v2495 = vunpack.c.h.b16 %v2314
        %v2496 = vunpack.c.l.b16 %v2315
        %v2497 = vunpack.c.h.b16 %v2315
        %v2498 = vunpack.c.l.b16 %v2316
        %v2499 = vunpack.c.h.b16 %v2316
        %v2500 = vunpack.c.l.b16 %v2317
        %v2501 = vunpack.c.h.b16 %v2317
        %v2502 = vunpack.c.l.b16 %v2318
        %v2503 = vunpack.c.h.b16 %v2318
        %v2504 = vunpack.c.l.b16 %v2319
        %v2505 = vunpack.c.h.b16 %v2319
        %v2506 = vunpack.c.l.b16 %v2320
        %v2507 = vunpack.c.h.b16 %v2320
        %v2508 = vunpack.c.l.b16 %v2321
        %v2509 = vunpack.c.h.b16 %v2321
        %v2510 = vunpack.c.l.b16 %v2322
        %v2511 = vunpack.c.h.b16 %v2322
        %v2512 = vunpack.c.l.b16 %v2323
        %v2513 = vunpack.c.h.b16 %v2323
        %v2514 = vunpack.c.l.b16 %v2324
        %v2515 = vunpack.c.h.b16 %v2324
        %v2516 = vunpack.c.l.b16 %v2325
        %v2517 = vunpack.c.h.b16 %v2325
        %v2518 = vpack.c.b16 %v2392, %v2390
        %v2519 = vpack.c.b16 %v2393, %v2391
        %v2520 = vpack.c.b16 %v2396, %v2394
        %v2521 = vpack.c.b16 %v2397, %v2395
        %v2522 = vpack.c.b16 %v2400, %v2398
        %v2523 = vpack.c.b16 %v2401, %v2399
        %v2524 = vpack.c.b16 %v2404, %v2402
        %v2525 = vpack.c.b16 %v2405, %v2403
        %v2526 = vpack.c.b16 %v2408, %v2406
        %v2527 = vpack.c.b16 %v2409, %v2407
        %v2528 = vpack.c.b16 %v2412, %v2410
        %v2529 = vpack.c.b16 %v2413, %v2411
        %v2530 = vpack.c.b16 %v2416, %v2414
        %v2531 = vpack.c.b16 %v2417, %v2415
        %v2532 = vpack.c.b16 %v2420, %v2418
        %v2533 = vpack.c.b16 %v2421, %v2419
        %v2534 = vpack.c.b16 %v2424, %v2422
        %v2535 = vpack.c.b16 %v2425, %v2423
        %v2536 = vpack.c.b16 %v2428, %v2426
        %v2537 = vpack.c.b16 %v2429, %v2427
        %v2538 = vpack.c.b16 %v2432, %v2430
        %v2539 = vpack.c.b16 %v2433, %v2431
        %v2540 = vpack.c.b16 %v2436, %v2434
        %v2541 = vpack.c.b16 %v2437, %v2435
        %v2542 = vpack.c.b16 %v2440, %v2438
        %v2543 = vpack.c.b16 %v2441, %v2439
        %v2544 = vpack.c.b16 %v2444, %v2442
        %v2545 = vpack.c.b16 %v2445, %v2443
        %v2546 = vpack.c.b16 %v2448, %v2446
        %v2547 = vpack.c.b16 %v2449, %v2447
        %v2548 = vpack.c.b16 %v2452, %v2450
        %v2549 = vpack.c.b16 %v2453, %v2451
        %v2550 = vpack.c.b16 %v2456, %v2454
        %v2551 = vpack.c.b16 %v2457, %v2455
        %v2552 = vpack.c.b16 %v2460, %v2458
        %v2553 = vpack.c.b16 %v2461, %v2459
        %v2554 = vpack.c.b16 %v2464, %v2462
        %v2555 = vpack.c.b16 %v2465, %v2463
        %v2556 = vpack.c.b16 %v2468, %v2466
        %v2557 = vpack.c.b16 %v2469, %v2467
        %v2558 = vpack.c.b16 %v2472, %v2470
        %v2559 = vpack.c.b16 %v2473, %v2471
        %v2560 = vpack.c.b16 %v2476, %v2474
        %v2561 = vpack.c.b16 %v2477, %v2475
        %v2562 = vpack.c.b16 %v2480, %v2478
        %v2563 = vpack.c.b16 %v2481, %v2479
        %v2564 = vpack.c.b16 %v2484, %v2482
        %v2565 = vpack.c.b16 %v2485, %v2483
        %v2566 = vpack.c.b16 %v2488, %v2486
        %v2567 = vpack.c.b16 %v2489, %v2487
        %v2568 = vpack.c.b16 %v2492, %v2490
        %v2569 = vpack.c.b16 %v2493, %v2491
        %v2570 = vpack.c.b16 %v2496, %v2494
        %v2571 = vpack.c.b16 %v2497, %v2495
        %v2572 = vpack.c.b16 %v2500, %v2498
        %v2573 = vpack.c.b16 %v2501, %v2499
        %v2574 = vpack.c.b16 %v2504, %v2502
        %v2575 = vpack.c.b16 %v2505, %v2503
        %v2576 = vpack.c.b16 %v2508, %v2506
        %v2577 = vpack.c.b16 %v2509, %v2507
        %v2578 = vpack.c.b16 %v2512, %v2510
        %v2579 = vpack.c.b16 %v2513, %v2511
        %v2580 = vpack.c.b16 %v2516, %v2514
        %v2581 = vpack.c.b16 %v2517, %v2515
        %2646 = vmatpush.bf16.msra.mxu0 %v2532
        %2647 = vmatpush.bf16.msra.mxu0 %v2530
        %2648 = vmatpush.bf16.msra.mxu0 %v2528
        %2649 = vmatpush.bf16.msra.mxu0 %v2526
        %2650 = vmatpush.bf16.msra.mxu0 %v2524
        %2651 = vmatpush.bf16.msra.mxu0 %v2522
        %2652 = vmatpush.bf16.msra.mxu0 %v2520
        %2653 = vmatpush.bf16.msra.mxu0 %v2518
        %2654 = vmatmul.bf16.gmra.mxu0 %v2246
        %v2655 = vpop.f32.mrf.mxu0
        %v2656 = vadd.f32 0.0, %v2655
        %v2657 = vpop.f32.mrf.mxu0
        %v2658 = vadd.f32 0.0, %v2657
        %2659 = vmatmul.bf16.gmra.mxu0 %v2250
        %v2660 = vpop.f32.mrf.mxu0
        %v2661 = vadd.f32 0.0, %v2660
        %v2662 = vpop.f32.mrf.mxu0
        %v2663 = vadd.f32 0.0, %v2662
        %2664 = vmatmul.bf16.gmra.mxu0 %v2254
        %v2665 = vpop.f32.mrf.mxu0
        %v2666 = vadd.f32 0.0, %v2665
        %v2667 = vpop.f32.mrf.mxu0
        %v2668 = vadd.f32 0.0, %v2667
        %2669 = vmatmul.bf16.gmra.mxu0 %v2258
        %v2670 = vpop.f32.mrf.mxu0
        %v2671 = vadd.f32 0.0, %v2670
        %v2672 = vpop.f32.mrf.mxu0
        %v2673 = vadd.f32 0.0, %v2672
        %2674 = vdwg.mxu0
        %2675 = vmatpush.bf16.msra.mxu0 %v2548
        %2676 = vmatpush.bf16.msra.mxu0 %v2546
        %2677 = vmatpush.bf16.msra.mxu0 %v2544
        %2678 = vmatpush.bf16.msra.mxu0 %v2542
        %2679 = vmatpush.bf16.msra.mxu0 %v2540
        %2680 = vmatpush.bf16.msra.mxu0 %v2538
        %2681 = vmatpush.bf16.msra.mxu0 %v2536
        %2682 = vmatpush.bf16.msra.mxu0 %v2534
        %2683 = vmatmul.bf16.gmra.mxu0 %v2247
        %v2684 = vpop.f32.mrf.mxu0
        %v2685 = vadd.f32 %v2656, %v2684
        %v2686 = vpop.f32.mrf.mxu0
        %v2687 = vadd.f32 %v2658, %v2686
        %2688 = vmatmul.bf16.gmra.mxu0 %v2251
        %v2689 = vpop.f32.mrf.mxu0
        %v2690 = vadd.f32 %v2661, %v2689
        %v2691 = vpop.f32.mrf.mxu0
        %v2692 = vadd.f32 %v2663, %v2691
        %2693 = vmatmul.bf16.gmra.mxu0 %v2255
        %v2694 = vpop.f32.mrf.mxu0
        %v2695 = vadd.f32 %v2666, %v2694
        %v2696 = vpop.f32.mrf.mxu0
        %v2697 = vadd.f32 %v2668, %v2696
        %2698 = vmatmul.bf16.gmra.mxu0 %v2259
        %v2699 = vpop.f32.mrf.mxu0
        %v2700 = vadd.f32 %v2671, %v2699
        %v2701 = vpop.f32.mrf.mxu0
        %v2702 = vadd.f32 %v2673, %v2701
        %2703 = vdwg.mxu0
        %2704 = vmatpush.bf16.msra.mxu0 %v2564
        %2705 = vmatpush.bf16.msra.mxu0 %v2562
        %2706 = vmatpush.bf16.msra.mxu0 %v2560
        %2707 = vmatpush.bf16.msra.mxu0 %v2558
        %2708 = vmatpush.bf16.msra.mxu0 %v2556
        %2709 = vmatpush.bf16.msra.mxu0 %v2554
        %2710 = vmatpush.bf16.msra.mxu0 %v2552
        %2711 = vmatpush.bf16.msra.mxu0 %v2550
        %2712 = vmatmul.bf16.gmra.mxu0 %v2248
        %v2713 = vpop.f32.mrf.mxu0
        %v2714 = vadd.f32 %v2685, %v2713
        %v2715 = vpop.f32.mrf.mxu0
        %v2716 = vadd.f32 %v2687, %v2715
        %2717 = vmatmul.bf16.gmra.mxu0 %v2252
        %v2718 = vpop.f32.mrf.mxu0
        %v2719 = vadd.f32 %v2690, %v2718
        %v2720 = vpop.f32.mrf.mxu0
        %v2721 = vadd.f32 %v2692, %v2720
        %2722 = vmatmul.bf16.gmra.mxu0 %v2256
        %v2723 = vpop.f32.mrf.mxu0
        %v2724 = vadd.f32 %v2695, %v2723
        %v2725 = vpop.f32.mrf.mxu0
        %v2726 = vadd.f32 %v2697, %v2725
        %2727 = vmatmul.bf16.gmra.mxu0 %v2260
        %v2728 = vpop.f32.mrf.mxu0
        %v2729 = vadd.f32 %v2700, %v2728
        %v2730 = vpop.f32.mrf.mxu0
        %v2731 = vadd.f32 %v2702, %v2730
        %2732 = vdwg.mxu0
        %2733 = vmatpush.bf16.msra.mxu0 %v2580
        %2734 = vmatpush.bf16.msra.mxu0 %v2578
        %2735 = vmatpush.bf16.msra.mxu0 %v2576
        %2736 = vmatpush.bf16.msra.mxu0 %v2574
        %2737 = vmatpush.bf16.msra.mxu0 %v2572
        %2738 = vmatpush.bf16.msra.mxu0 %v2570
        %2739 = vmatpush.bf16.msra.mxu0 %v2568
        %2740 = vmatpush.bf16.msra.mxu0 %v2566
        %2741 = vmatmul.bf16.gmra.mxu0 %v2249
        %v2742 = vpop.f32.mrf.mxu0
        %v2743 = vadd.f32 %v2714, %v2742
        %v2744 = vpop.f32.mrf.mxu0
        %v2745 = vadd.f32 %v2716, %v2744
        %2746 = vmatmul.bf16.gmra.mxu0 %v2253
        %v2747 = vpop.f32.mrf.mxu0
        %v2748 = vadd.f32 %v2719, %v2747
        %v2749 = vpop.f32.mrf.mxu0
        %v2750 = vadd.f32 %v2721, %v2749
        %2751 = vmatmul.bf16.gmra.mxu0 %v2257
        %v2752 = vpop.f32.mrf.mxu0
        %v2753 = vadd.f32 %v2724, %v2752
        %v2754 = vpop.f32.mrf.mxu0
        %v2755 = vadd.f32 %v2726, %v2754
        %2756 = vmatmul.bf16.gmra.mxu0 %v2261
        %v2757 = vpop.f32.mrf.mxu0
        %v2758 = vadd.f32 %v2729, %v2757
        %v2759 = vpop.f32.mrf.mxu0
        %v2760 = vadd.f32 %v2731, %v2759
        %2761 = vdwg.mxu0
        %2762 = vmatpush.bf16.msra.mxu0 %v2533
        %2763 = vmatpush.bf16.msra.mxu0 %v2531
        %2764 = vmatpush.bf16.msra.mxu0 %v2529
        %2765 = vmatpush.bf16.msra.mxu0 %v2527
        %2766 = vmatpush.bf16.msra.mxu0 %v2525
        %2767 = vmatpush.bf16.msra.mxu0 %v2523
        %2768 = vmatpush.bf16.msra.mxu0 %v2521
        %2769 = vmatpush.bf16.msra.mxu0 %v2519
        %2770 = vmatmul.bf16.gmra.mxu0 %v2246
        %v2771 = vpop.f32.mrf.mxu0
        %v2772 = vadd.f32 0.0, %v2771
        %v2773 = vpop.f32.mrf.mxu0
        %v2774 = vadd.f32 0.0, %v2773
        %2775 = vmatmul.bf16.gmra.mxu0 %v2250
        %v2776 = vpop.f32.mrf.mxu0
        %v2777 = vadd.f32 0.0, %v2776
        %v2778 = vpop.f32.mrf.mxu0
        %v2779 = vadd.f32 0.0, %v2778
        %2780 = vmatmul.bf16.gmra.mxu0 %v2254
        %v2781 = vpop.f32.mrf.mxu0
        %v2782 = vadd.f32 0.0, %v2781
        %v2783 = vpop.f32.mrf.mxu0
        %v2784 = vadd.f32 0.0, %v2783
        %2785 = vmatmul.bf16.gmra.mxu0 %v2258
        %v2786 = vpop.f32.mrf.mxu0
        %v2787 = vadd.f32 0.0, %v2786
        %v2788 = vpop.f32.mrf.mxu0
        %v2789 = vadd.f32 0.0, %v2788
        %2790 = vdwg.mxu0
        %2791 = vmatpush.bf16.msra.mxu0 %v2549
        %2792 = vmatpush.bf16.msra.mxu0 %v2547
        %2793 = vmatpush.bf16.msra.mxu0 %v2545
        %2794 = vmatpush.bf16.msra.mxu0 %v2543
        %2795 = vmatpush.bf16.msra.mxu0 %v2541
        %2796 = vmatpush.bf16.msra.mxu0 %v2539
        %2797 = vmatpush.bf16.msra.mxu0 %v2537
        %2798 = vmatpush.bf16.msra.mxu0 %v2535
        %2799 = vmatmul.bf16.gmra.mxu0 %v2247
        %v2800 = vpop.f32.mrf.mxu0
        %v2801 = vadd.f32 %v2772, %v2800
        %v2802 = vpop.f32.mrf.mxu0
        %v2803 = vadd.f32 %v2774, %v2802
        %2804 = vmatmul.bf16.gmra.mxu0 %v2251
        %v2805 = vpop.f32.mrf.mxu0
        %v2806 = vadd.f32 %v2777, %v2805
        %v2807 = vpop.f32.mrf.mxu0
        %v2808 = vadd.f32 %v2779, %v2807
        %2809 = vmatmul.bf16.gmra.mxu0 %v2255
        %v2810 = vpop.f32.mrf.mxu0
        %v2811 = vadd.f32 %v2782, %v2810
        %v2812 = vpop.f32.mrf.mxu0
        %v2813 = vadd.f32 %v2784, %v2812
        %2814 = vmatmul.bf16.gmra.mxu0 %v2259
        %v2815 = vpop.f32.mrf.mxu0
        %v2816 = vadd.f32 %v2787, %v2815
        %v2817 = vpop.f32.mrf.mxu0
        %v2818 = vadd.f32 %v2789, %v2817
        %2819 = vdwg.mxu0
        %2820 = vmatpush.bf16.msra.mxu0 %v2565
        %2821 = vmatpush.bf16.msra.mxu0 %v2563
        %2822 = vmatpush.bf16.msra.mxu0 %v2561
        %2823 = vmatpush.bf16.msra.mxu0 %v2559
        %2824 = vmatpush.bf16.msra.mxu0 %v2557
        %2825 = vmatpush.bf16.msra.mxu0 %v2555
        %2826 = vmatpush.bf16.msra.mxu0 %v2553
        %2827 = vmatpush.bf16.msra.mxu0 %v2551
        %2828 = vmatmul.bf16.gmra.mxu0 %v2248
        %v2829 = vpop.f32.mrf.mxu0
        %v2830 = vadd.f32 %v2801, %v2829
        %v2831 = vpop.f32.mrf.mxu0
        %v2832 = vadd.f32 %v2803, %v2831
        %2833 = vmatmul.bf16.gmra.mxu0 %v2252
        %v2834 = vpop.f32.mrf.mxu0
        %v2835 = vadd.f32 %v2806, %v2834
        %v2836 = vpop.f32.mrf.mxu0
        %v2837 = vadd.f32 %v2808, %v2836
        %2838 = vmatmul.bf16.gmra.mxu0 %v2256
        %v2839 = vpop.f32.mrf.mxu0
        %v2840 = vadd.f32 %v2811, %v2839
        %v2841 = vpop.f32.mrf.mxu0
        %v2842 = vadd.f32 %v2813, %v2841
        %2843 = vmatmul.bf16.gmra.mxu0 %v2260
        %v2844 = vpop.f32.mrf.mxu0
        %v2845 = vadd.f32 %v2816, %v2844
        %v2846 = vpop.f32.mrf.mxu0
        %v2847 = vadd.f32 %v2818, %v2846
        %2848 = vdwg.mxu0
        %2849 = vmatpush.bf16.msra.mxu0 %v2581
        %2850 = vmatpush.bf16.msra.mxu0 %v2579
        %2851 = vmatpush.bf16.msra.mxu0 %v2577
        %2852 = vmatpush.bf16.msra.mxu0 %v2575
        %2853 = vmatpush.bf16.msra.mxu0 %v2573
        %2854 = vmatpush.bf16.msra.mxu0 %v2571
        %2855 = vmatpush.bf16.msra.mxu0 %v2569
        %2856 = vmatpush.bf16.msra.mxu0 %v2567
        %2857 = vmatmul.bf16.gmra.mxu0 %v2249
        %v2858 = vpop.f32.mrf.mxu0
        %v2859 = vadd.f32 %v2830, %v2858
        %v2860 = vpop.f32.mrf.mxu0
        %v2861 = vadd.f32 %v2832, %v2860
        %2862 = vmatmul.bf16.gmra.mxu0 %v2253
        %v2863 = vpop.f32.mrf.mxu0
        %v2864 = vadd.f32 %v2835, %v2863
        %v2865 = vpop.f32.mrf.mxu0
        %v2866 = vadd.f32 %v2837, %v2865
        %2867 = vmatmul.bf16.gmra.mxu0 %v2257
        %v2868 = vpop.f32.mrf.mxu0
        %v2869 = vadd.f32 %v2840, %v2868
        %v2870 = vpop.f32.mrf.mxu0
        %v2871 = vadd.f32 %v2842, %v2870
        %2872 = vmatmul.bf16.gmra.mxu0 %v2261
        %v2873 = vpop.f32.mrf.mxu0
        %v2874 = vadd.f32 %v2845, %v2873
        %v2875 = vpop.f32.mrf.mxu0
        %v2876 = vadd.f32 %v2847, %v2875
        %2877 = vdwg.mxu0
        %v2878 = vadd.f32 %v2230, %v2743
        %v2879 = vadd.f32 %v2231, %v2859
        %v2880 = vadd.f32 %v2232, %v2745
        %v2881 = vadd.f32 %v2233, %v2861
        %v2882 = vadd.f32 %v2234, %v2748
        %v2883 = vadd.f32 %v2235, %v2864
        %v2884 = vadd.f32 %v2236, %v2750
        %v2885 = vadd.f32 %v2237, %v2866
        %v2886 = vadd.f32 %v2238, %v2753
        %v2887 = vadd.f32 %v2239, %v2869
        %v2888 = vadd.f32 %v2240, %v2755
        %v2889 = vadd.f32 %v2241, %v2871
        %v2890 = vadd.f32 %v2242, %v2758
        %v2891 = vadd.f32 %v2243, %v2874
        %v2892 = vadd.f32 %v2244, %v2760
        %v2893 = vadd.f32 %v2245, %v2876
        %2894 = vst [vmem:[#allocation2] sm:$0xff] %v2878
        %2895 = vst [vmem:[#allocation2 + $0x8] sm:$0xff] %v2879
        %2896 = vst [vmem:[#allocation2 + $0x10] sm:$0xff] %v2880
        %2897 = vst [vmem:[#allocation2 + $0x18] sm:$0xff] %v2881
        %2898 = vst [vmem:[#allocation2 + $0x20] sm:$0xff] %v2882
        %2899 = vst [vmem:[#allocation2 + $0x28] sm:$0xff] %v2883
        %2900 = vst [vmem:[#allocation2 + $0x30] sm:$0xff] %v2884
        %2901 = vst [vmem:[#allocation2 + $0x38] sm:$0xff] %v2885
        %2902 = vst [vmem:[#allocation2 + $0x40] sm:$0xff] %v2886
        %2903 = vst [vmem:[#allocation2 + $0x48] sm:$0xff] %v2887
        %2904 = vst [vmem:[#allocation2 + $0x50] sm:$0xff] %v2888
        %2905 = vst [vmem:[#allocation2 + $0x58] sm:$0xff] %v2889
        %2906 = vst [vmem:[#allocation2 + $0x60] sm:$0xff] %v2890
        %2907 = vst [vmem:[#allocation2 + $0x68] sm:$0xff] %v2891
        %2908 = vst [vmem:[#allocation2 + $0x70] sm:$0xff] %v2892
        %2909 = vst [vmem:[#allocation2 + $0x78] sm:$0xff] %v2893
        // Predicated region
        $region49: #{tpu_custom_call.1} parent=31 // pred_check
          %p2910 = pneg %p258
        $region50: #{tpu_custom_call.1} parent=31 // pred_check_branch
          %2912 = sbr.rel (%p2910) target = $region52
        $region51: #{tpu_custom_call.1} parent=31 // pred_region
          %v2913 = vld [vmem:[#allocation2] sm:$0xff]
          %v2914 = vld [vmem:[#allocation2 + $0x8] sm:$0xff]
          %v2915 = vld [vmem:[#allocation2 + $0x10] sm:$0xff]
          %v2916 = vld [vmem:[#allocation2 + $0x18] sm:$0xff]
          %v2917 = vld [vmem:[#allocation2 + $0x20] sm:$0xff]
          %v2918 = vld [vmem:[#allocation2 + $0x28] sm:$0xff]
          %v2919 = vld [vmem:[#allocation2 + $0x30] sm:$0xff]
          %v2920 = vld [vmem:[#allocation2 + $0x38] sm:$0xff]
          %v2921 = vld [vmem:[#allocation2 + $0x40] sm:$0xff]
          %v2922 = vld [vmem:[#allocation2 + $0x48] sm:$0xff]
          %v2923 = vld [vmem:[#allocation2 + $0x50] sm:$0xff]
          %v2924 = vld [vmem:[#allocation2 + $0x58] sm:$0xff]
          %v2925 = vld [vmem:[#allocation2 + $0x60] sm:$0xff]
          %v2926 = vld [vmem:[#allocation2 + $0x68] sm:$0xff]
          %v2927 = vld [vmem:[#allocation2 + $0x70] sm:$0xff]
          %v2928 = vld [vmem:[#allocation2 + $0x78] sm:$0xff]
          %v2929 = vpack.c.bf16 %v2914, %v2913
          %v2930 = vpack.c.bf16 %v2916, %v2915
          %v2931 = vpack.c.bf16 %v2918, %v2917
          %v2932 = vpack.c.bf16 %v2920, %v2919
          %v2933 = vpack.c.bf16 %v2922, %v2921
          %v2934 = vpack.c.bf16 %v2924, %v2923
          %v2935 = vpack.c.bf16 %v2926, %v2925
          %v2936 = vpack.c.bf16 %v2928, %v2927
          %2937 = vst [vmem:[%s253] sm:$0xff] %v2929
          %2938 = vst [vmem:[%s253 + $0x8] sm:$0xff] %v2930
          %2939 = vst [vmem:[%s253 + $0x10] sm:$0xff] %v2931
          %2940 = vst [vmem:[%s253 + $0x18] sm:$0xff] %v2932
          %2941 = vst [vmem:[%s253 + $0x20] sm:$0xff] %v2933
          %2942 = vst [vmem:[%s253 + $0x28] sm:$0xff] %v2934
          %2943 = vst [vmem:[%s253 + $0x30] sm:$0xff] %v2935
          %2944 = vst [vmem:[%s253 + $0x38] sm:$0xff] %v2936
        $region52: #{tpu_custom_call.1} parent=31 // pred_fallthru
          _
        %s2945 = sand.u32 %s119, 1
        %s2946 = scalar_lea.sflag [#allocation5], %s2945
        %s2947 = sand.u32 %s119, 1
        %s2948 = smul.addr %s2947, 64
        %s2949 = scalar_lea.vmem [#allocation9], %s2948
        // Predicated region
        $region53: #{tpu_custom_call.1} parent=31 // pred_check
          %p2950 = pneg %p129
        $region54: #{tpu_custom_call.1} parent=31 // pred_check_branch
          %2952 = sbr.rel (%p2950) target = $region56
        $region55: #{tpu_custom_call.1} parent=31 // pred_region
          %s2953 = smul.u32 8, %s25
          %2955 = vsyncadd %s2946, 0
          %s2956 = smul.addr %s2953, 2
          %s2957 = smul.addr %s2956, 4
          %s2958 = scalar_lea.hbm %s3, %s2957
          %s2959 = sshll.u32 %s2949, 4
          %s2960 = int_to_ptr.vmem [resolvable:$true] %s2959
          %s2961 = sshll.u32 %s2958, 4
          %s2962 = int_to_ptr.hbm [resolvable:$true] %s2961
          %2967 = dma.vmem_to_hbm [thread:$0]  %s2960, 1024, %s2962, %s2946, 128, 128, 8
        $region56: #{tpu_custom_call.1} parent=31 // pred_fallthru
          _
      $region32: #{tpu_custom_call.1} parent=5 // pred_fallthru
        _
      %p2968 = scmp.le.s32.totalorder 2, %s16
      // Predicated region
      $region57: #{tpu_custom_call.1} parent=5 // pred_check
        %p2969 = pneg %p2968
      $region58: #{tpu_custom_call.1} parent=5 // pred_check_branch
        %2971 = sbr.rel (%p2969) target = $region60
      $region59: #{tpu_custom_call.1} parent=5 // pred_region
        %s2972 = ssub.s32 %s16, 2
        // Predicated region
        $region61: #{tpu_custom_call.1} parent=59 // pred_check
          %p2973 = pneg %p135
        $region62: #{tpu_custom_call.1} parent=59 // pred_check_branch
          %2975 = sbr.rel (%p2973) target = $region64
        $region63: #{tpu_custom_call.1} parent=59 // pred_region
          %s2976 = sand.u32 %s120, 1
          %s2977 = scalar_lea.sflag [#allocation5], %s2976
          %s2978 = sand.u32 %s120, 1
          %s2979 = smul.addr %s2978, 64
          %s2980 = scalar_lea.vmem [#allocation9], %s2979
          %2982 = dma.done %s2977, 1024
        $region64: #{tpu_custom_call.1} parent=59 // pred_fallthru
          _
      $region60: #{tpu_custom_call.1} parent=5 // pred_fallthru
        _
    $region6: #{tpu_custom_call.1} parent=1 // loop_footer
      %s20 = sadd.s32 1, %s16
    $region7: #{tpu_custom_call.1} parent=1 // loop_footer_branch
      %15 = sbr.rel target = $region3
    $region8: #{tpu_custom_call.1} parent=1 // loop_exit
      _
    %2983 = vsyncpa [#allocation4], 1
    %s2984 = scalar_lea.sflag [#allocation4], 1
    %2985 = vsyncpa %s2984, 1
    %2986 = vsyncpa [#allocation7], 1
    %2987 = vsyncpa [#allocation5], 1
    %s2988 = scalar_lea.sflag [#allocation5], 1
    %2989 = vsyncpa %s2988, 1

</llo_original>
